<compile_context>
chip_gen: v5e
topology: v5e:2x2
jax: 0.10.0
libtpu: 0.0.40
codegen_flags: <defaults>
</compile_context>

<pallas_src>
import functools
import math

import numpy as np
import jax
import jax.numpy as jnp
from jax.experimental import pallas as pl
from jax.experimental.pallas import tpu as pltpu

LEAKY_SLOPE = 0.01   # nn.LeakyReLU default
LN_EPS = 1e-5
BN_EPS = 1e-5
HID = 16
NUM_CLASSES = 10
_SUBLANE = 8         # sublane alignment for the im2row slab


def _leaky_relu(x):
    return jnp.where(x > 0, x, LEAKY_SLOPE * x)


def _tap_stride(C):
    return ((C + _SUBLANE - 1) // _SUBLANE) * _SUBLANE


# ----------------------------------------------------------------------------
# Fused kernel: RepeatBlock (BN->LReLU->Conv3x3->BN->LReLU->Conv3x3 +identity)
#               -> AdaptiveAvgPool(1,1) -> concat(accum/100) -> fc & halt heads
# Compute layout is (C, B*H*W) lane-dense; single gridless invocation.
# ----------------------------------------------------------------------------
def _make_kernel(B, C, H, W):
    N = B * H * W
    HW = H * W
    F = C + 1
    H2 = 2 * HID
    TS = _tap_stride(C)
    O = NUM_CLASSES + 1

    def kernel(data_ref, masks_ref, wconv_ref, wheads_ref, vecs_ref,
               out_ref, stack_ref, pooled_ref, h2_ref):
        x = data_ref[0:C, :]                       # (C, N) lane-dense input
        a = data_ref[C:C + 1, 0:B]                 # (1, B) accum / 100

        # ---- unpack packed parameter slabs with static slices ----
        s1 = vecs_ref[0:C, 0:1]; t1 = vecs_ref[0:C, 1:2]; b1 = vecs_ref[0:C, 2:3]
        s2 = vecs_ref[0:C, 3:4]; t2 = vecs_ref[0:C, 4:5]; b2 = vecs_ref[0:C, 5:6]
        b1m = vecs_ref[0:H2, 6:7]                  # (2*HID, 1) merged Linear1 bias
        c2m = vecs_ref[0:O, 7:8]                   # (11, 1)    merged Linear2 bias
        w1p = wheads_ref[0:H2, 0:C]                # (2*HID, C) acts on pooled feats
        w1a = wheads_ref[0:H2, C:C + 1]            # (2*HID, 1) acts on accum feat
        w2m = wheads_ref[H2:H2 + O, 0:H2]          # (11, 2*HID) block-diag Linear2

        # Zero the im2row slab once: rows [t*TS+C, t*TS+TS) stay zero and their
        # weight columns are zero, so they never contribute to the matmul.
        stack_ref[...] = jnp.zeros((9 * TS, N), jnp.float32)

        def conv3x3(inp, w):
            # im2row: 9 rolled + border-masked copies -> one (C,9*TS)@(9*TS,N)
            # MXU matmul.  The flat roll can wrap across image / batch
            # boundaries, but every out-of-bounds tap position is zeroed by its
            # border mask and every in-bounds tap stays inside its own image,
            # so wrapped values are always masked out.  Keep this invariant if
            # the (C, B*H*W) layout ever changes.
            for kh in range(3):
                for kw in range(3):
                    t = kh * 3 + kw
                    s = (kh - 1) * W + (kw - 1)    # flat spatial shift
                    if s == 0:
                        shifted = inp
                    else:
                        shifted = pltpu.roll(inp, (-s) % N, axis=1)   # XLU
                        shifted = shifted * masks_ref[t:t + 1, :]
                    stack_ref[t * TS:t * TS + C, :] = shifted
            return jnp.dot(w, stack_ref[...],
                           preferred_element_type=jnp.float32)        # (C, N)

        # ---- RepeatBlock (BN folded to scale/shift; Dropout2d = identity) ----
        t = _leaky_relu(x * s1 + t1)
        y1 = conv3x3(t, wconv_ref[0:C, :]) + b1
        t = _leaky_relu(y1 * s2 + t2)
        res = conv3x3(t, wconv_ref[TS:TS + C, :]) + b2 + x             # (C, N)

        # ---- AdaptiveAvgPool2d((1,1)): per-image lane-segment reductions ----
        for b in range(B):
            seg = res[:, b * HW:(b + 1) * HW]
            pooled_ref[:, b:b + 1] = jnp.sum(seg, axis=1, keepdims=True)
        pooled = pooled_ref[...] * (1.0 / HW)                          # (C, B)

        # ---- shared LayerNorm(C+1) statistics over [pooled ; accum] ----
        mu = (jnp.sum(pooled, axis=0, keepdims=True) + a) / F          # (1, B)
        dp = pooled - mu
        da = a - mu
        var = (jnp.sum(dp * dp, axis=0, keepdims=True) + da * da) / F
        inv = jax.lax.rsqrt(var + LN_EPS)
        npool = dp * inv                                               # (C, B)
        nacc = da * inv                                                # (1, B)

        # ---- merged first Linear of both heads (LN1 affine pre-folded) ----
        h1 = _leaky_relu(
            jnp.dot(w1p, npool, preferred_element_type=jnp.float32)
            + w1a * nacc + b1m)                                        # (2*HID, B)

        def ln16(v):   # LayerNorm(16); its affine is folded into Linear2
            m = jnp.mean(v, axis=0, keepdims=True)
            c = v - m
            vv = jnp.mean(c * c, axis=0, keepdims=True)
            return c * jax.lax.rsqrt(vv + LN_EPS)

        h2_ref[0:HID, :] = ln16(h1[0:HID, :])          # fc branch features
        h2_ref[HID:H2, :] = ln16(h1[HID:H2, :])        # halt branch features

        # ---- merged second Linear (block-diagonal) + bias ----
        out2 = jnp.dot(w2m, h2_ref[...],
                       preferred_element_type=jnp.float32) + c2m       # (11, B)

        # Row NUM_CLASSES is the halt logit -> exact sigmoid; others = logits.
        sig = 1.0 / (1.0 + jnp.exp(-out2))
        is_halt = jax.lax.broadcasted_iota(jnp.int32, (O, B), 0) == NUM_CLASSES
        out_ref[...] = jnp.where(is_halt, sig, out2)

    return kernel


def _fused_call(data, masks, packed, B, C, H, W):
    N = B * H * W
    TS = _tap_stride(C)
    vmem = lambda: pl.BlockSpec(memory_space=pltpu.MemorySpace.VMEM)
    # Whole problem is well under 1 MiB of VMEM at these shapes; no grid needed.
    return pl.pallas_call(
        _make_kernel(B, C, H, W),
        out_shape=jax.ShapeDtypeStruct((NUM_CLASSES + 1, B), jnp.float32),
        in_specs=[vmem() for _ in range(5)],
        out_specs=vmem(),
        scratch_shapes=[
            pltpu.VMEM((9 * TS, N), jnp.float32),      # im2row slab
            pltpu.VMEM((C, B), jnp.float32),           # pooled assembly
            pltpu.VMEM((2 * HID, B), jnp.float32),     # LN16 feature assembly
        ],
    )(data, masks, packed["wconv"], packed["wheads"], packed["vecs"])


def _tap_masks(B, H, W):
    # Built with numpy at trace time -> baked in as a device constant.
    hw = np.arange(H * W)
    hh = np.tile(hw // W, B)
    ww = np.tile(hw % W, B)
    rows = []
    for dh in (-1, 0, 1):
        for dw in (-1, 0, 1):
            ok = (hh + dh >= 0) & (hh + dh < H) & (ww + dw >= 0) & (ww + dw < W)
            rows.append(ok.astype(np.float32))
    return np.stack(rows)                               # (9, B*H*W)


# ----------------------------------------------------------------------------
# Forward wrapper matching net.forward(x, cnt, halt, accum)  (jitted).
# ----------------------------------------------------------------------------
@functools.partial(jax.jit, static_argnames=("training",))
def net_forward(x_nchw, cnt, halt, accum, packed, training=False):
    B, C, H, W = x_nchw.shape
    N = B * H * W

    # Layout plumbing (all fused under one jit dispatch):
    # NCHW -> lane-dense (C, N) with flat order (b, h, w); accum/100 appended
    # as one extra row so activations + accum arrive in a single DMA.
    x_cn = jnp.transpose(x_nchw.astype(jnp.float32), (1, 0, 2, 3)).reshape(C, N)
    acc_row = jnp.zeros((1, N), jnp.float32).at[0, :B].set(
        accum.astype(jnp.float32) / 100.0)
    data = jnp.concatenate([x_cn, acc_row], axis=0)      # (C+1, N)
    masks = jnp.asarray(_tap_masks(B, H, W))             # trace-time constant

    out = _fused_call(data, masks, packed, B, C, H, W)   # (NUM_CLASSES+1, B)
    logits = out[:NUM_CLASSES].T                         # (B, 10)
    y = out[NUM_CLASSES]                                 # (B,) halt probability
    which = y >= 0.5                                     # halting decision

    # TODO(synk): the data-dependent recursive halting branch of the reference
    # (x[which] = self.forward(x[which], cnt+1, ...)) is host-side control flow
    # with a shape-changing base case; only the terminating-branch semantics
    # are implemented, so the full (B,C,H,W) block output never hits HBM.
    del which
    if training:
        return logits, jnp.mean(halt + y)
    return logits, cnt


# ----------------------------------------------------------------------------
# Parameter init (deterministic, synthetic) + packing into 3 slabs.
# ----------------------------------------------------------------------------
def init_params(key, planes):
    C = planes
    F = C + 1
    H2 = 2 * HID
    O = NUM_CLASSES + 1
    TS = _tap_stride(C)

    keys = iter(jax.random.split(key, 64))

    def n(shape, scale=0.1):
        return scale * jax.random.normal(next(keys), shape, jnp.float32)

    def bn_fold():  # eval-mode BatchNorm -> per-channel scale/shift
        gamma = 1.0 + n((C,))
        beta = n((C,))
        mean = n((C,))
        var = 1.0 + jnp.abs(n((C,)))
        scale = gamma * jax.lax.rsqrt(var + BN_EPS)
        shift = beta - mean * scale
        return scale.reshape(C, 1), shift.reshape(C, 1)

    def conv_w():   # PyTorch (Cout, Cin, kh, kw) -> im2row (Cout, 9*TS)
        wt = n((C, C, 3, 3), 1.0 / math.sqrt(9 * C))
        wm = jnp.zeros((C, 9 * TS), jnp.float32)
        for t in range(9):
            kh, kw = divmod(t, 3)
            wm = wm.at[:, t * TS:t * TS + C].set(wt[:, :, kh, kw])
        return wm

    s1, t1 = bn_fold()
    s2, t2 = bn_fold()
    w1c = conv_w(); b1c = n((C, 1))
    w2c = conv_w(); b2c = n((C, 1))

    wconv = jnp.zeros((2 * TS, 9 * TS), jnp.float32)
    wconv = wconv.at[0:C, :].set(w1c).at[TS:TS + C, :].set(w2c)

    def head(out_dim):
        g1 = 1.0 + n((F,)); be1 = n((F,))
        W1 = n((HID, F), 1.0 / math.sqrt(F)); c1 = n((HID,))
        g2 = 1.0 + n((HID,)); be2 = n((HID,))
        W2 = n((out_dim, HID), 0.25); c2 = n((out_dim,))
        # Fold both LayerNorm affines into the adjacent Linears (exact):
        #   W1 @ (g1*z + be1) + c1 = (W1*g1) @ z + (W1 @ be1 + c1)
        #   W2 @ (g2*u + be2) + c2 = (W2*g2) @ u + (W2 @ be2 + c2)
        return (W1 * g1[None, :], c1 + W1 @ be1,
                W2 * g2[None, :], c2 + W2 @ be2)

    fW1, fc1, fW2, fc2 = head(NUM_CLASSES)
    hW1, hc1, hW2, hc2 = head(1)

    w1m = jnp.concatenate([fW1, hW1], axis=0)            # (2*HID, F)
    b1m = jnp.concatenate([fc1, hc1], axis=0)            # (2*HID,)
    c2m = jnp.concatenate([fc2, hc2], axis=0)            # (11,)

    cols = max(F, H2)
    wheads = jnp.zeros((H2 + O, cols), jnp.float32)      # Linear1 + Linear2 slab
    wheads = wheads.at[0:H2, 0:F].set(w1m)
    wheads = wheads.at[H2:H2 + NUM_CLASSES, 0:HID].set(fW2)
    wheads = wheads.at[H2 + NUM_CLASSES:H2 + O, HID:H2].set(hW2)

    rows = max(C, H2, O)
    vecs = jnp.zeros((rows, 8), jnp.float32)             # all small vectors
    vecs = (vecs.at[0:C, 0].set(s1[:, 0]).at[0:C, 1].set(t1[:, 0])
                .at[0:C, 2].set(b1c[:, 0]).at[0:C, 3].set(s2[:, 0])
                .at[0:C, 4].set(t2[:, 0]).at[0:C, 5].set(b2c[:, 0])
                .at[0:H2, 6].set(b1m).at[0:O, 7].set(c2m))

    return dict(wconv=wconv, wheads=wheads, vecs=vecs)


if __name__ == "__main__":
    B, C, H, W = 2, 4, 16, 16
    key = jax.random.PRNGKey(0)
    kx, kp = jax.random.split(key)

    x = jax.random.normal(kx, (B, C, H, W), jnp.float32)   # NCHW like PyTorch
    cnt = 0
    halt0 = jnp.zeros((B,), jnp.float32)
    accum0 = jnp.zeros((B,), jnp.float32)
    packed = init_params(kp, C)

    logits, ret_cnt = net_forward(x, cnt, halt0, accum0, packed)
    jax.block_until_ready(logits)
    assert logits.shape == (B, NUM_CLASSES)

    # second call exercises the cached jit path (single dispatch, no rebuilds)
    logits2, _ = net_forward(x, cnt, halt0, accum0, packed)
    jax.block_until_ready(logits2)
    assert logits2.shape == (B, NUM_CLASSES)
    print("KERNEL_OK")
</pallas_src>

<mosaic_0001>
module attributes {stable_mosaic.version = 11 : i64} {
  func.func @kernel(%arg0: memref<5x512xf32, #tpu.memory_space<vmem>>, %arg1: memref<9x512xf32, #tpu.memory_space<vmem>>, %arg2: memref<16x72xf32, #tpu.memory_space<vmem>>, %arg3: memref<43x32xf32, #tpu.memory_space<vmem>>, %arg4: memref<32x8xf32, #tpu.memory_space<vmem>>, %arg5: memref<11x2xf32, #tpu.memory_space<vmem>>, %arg6: memref<72x512xf32, #tpu.memory_space<vmem>>, %arg7: memref<4x2xf32, #tpu.memory_space<vmem>>, %arg8: memref<32x2xf32, #tpu.memory_space<vmem>>) attributes {dimension_semantics = [], scalar_prefetch = 0 : i64, scratch_operands = 3 : i64, tpu.core_type = #tpu.core_type<tc>} {
    %c0 = arith.constant 0 : index
    %c0_0 = arith.constant 0 : index
    %0 = vector.load %arg0[%c0, %c0_0] : memref<5x512xf32, #tpu.memory_space<vmem>>, vector<4x512xf32>
    %c4 = arith.constant 4 : index
    %c0_1 = arith.constant 0 : index
    %1 = vector.load %arg0[%c4, %c0_1] : memref<5x512xf32, #tpu.memory_space<vmem>>, vector<1x2xf32>
    %c0_2 = arith.constant 0 : index
    %c0_3 = arith.constant 0 : index
    %2 = vector.load %arg4[%c0_2, %c0_3] : memref<32x8xf32, #tpu.memory_space<vmem>>, vector<4x1xf32>
    %c0_4 = arith.constant 0 : index
    %c1 = arith.constant 1 : index
    %3 = vector.load %arg4[%c0_4, %c1] : memref<32x8xf32, #tpu.memory_space<vmem>>, vector<4x1xf32>
    %c0_5 = arith.constant 0 : index
    %c2 = arith.constant 2 : index
    %4 = vector.load %arg4[%c0_5, %c2] : memref<32x8xf32, #tpu.memory_space<vmem>>, vector<4x1xf32>
    %c0_6 = arith.constant 0 : index
    %c3 = arith.constant 3 : index
    %5 = vector.load %arg4[%c0_6, %c3] : memref<32x8xf32, #tpu.memory_space<vmem>>, vector<4x1xf32>
    %c0_7 = arith.constant 0 : index
    %c4_8 = arith.constant 4 : index
    %6 = vector.load %arg4[%c0_7, %c4_8] : memref<32x8xf32, #tpu.memory_space<vmem>>, vector<4x1xf32>
    %c0_9 = arith.constant 0 : index
    %c5 = arith.constant 5 : index
    %7 = vector.load %arg4[%c0_9, %c5] : memref<32x8xf32, #tpu.memory_space<vmem>>, vector<4x1xf32>
    %c0_10 = arith.constant 0 : index
    %c6 = arith.constant 6 : index
    %8 = vector.load %arg4[%c0_10, %c6] : memref<32x8xf32, #tpu.memory_space<vmem>>, vector<32x1xf32>
    %c0_11 = arith.constant 0 : index
    %c7 = arith.constant 7 : index
    %9 = vector.load %arg4[%c0_11, %c7] : memref<32x8xf32, #tpu.memory_space<vmem>>, vector<11x1xf32>
    %c0_12 = arith.constant 0 : index
    %c0_13 = arith.constant 0 : index
    %10 = vector.load %arg3[%c0_12, %c0_13] : memref<43x32xf32, #tpu.memory_space<vmem>>, vector<32x4xf32>
    %c0_14 = arith.constant 0 : index
    %c4_15 = arith.constant 4 : index
    %11 = vector.load %arg3[%c0_14, %c4_15] : memref<43x32xf32, #tpu.memory_space<vmem>>, vector<32x1xf32>
    %c32 = arith.constant 32 : index
    %c0_16 = arith.constant 0 : index
    %12 = vector.load %arg3[%c32, %c0_16] : memref<43x32xf32, #tpu.memory_space<vmem>>, vector<11x32xf32>
    %cst = arith.constant 0.000000e+00 : f32
    %13 = vector.broadcast %cst : f32 to vector<72x512xf32>
    %c0_17 = arith.constant 0 : index
    %c0_18 = arith.constant 0 : index
    %14 = vector.load %arg6[%c0_17, %c0_18] : memref<72x512xf32, #tpu.memory_space<vmem>>, vector<72x512xf32>
    tpu.vector_store %arg6[%c0_17, %c0_18], %13 {strides = array<i32>} : memref<72x512xf32, #tpu.memory_space<vmem>>, vector<72x512xf32>,
    %15 = vector.broadcast %2 : vector<4x1xf32> to vector<4x512xf32>
    %16 = arith.mulf %0, %15 : vector<4x512xf32>
    %17 = vector.broadcast %3 : vector<4x1xf32> to vector<4x512xf32>
    %18 = arith.addf %16, %17 : vector<4x512xf32>
    %cst_19 = arith.constant 0.000000e+00 : f32
    %19 = vector.broadcast %cst_19 : f32 to vector<4x512xf32>
    %20 = arith.cmpf ogt, %18, %19 : vector<4x512xf32>
    %cst_20 = arith.constant 0.00999999977 : f32
    %21 = vector.broadcast %cst_20 : f32 to vector<4x512xf32>
    %22 = arith.mulf %21, %18 : vector<4x512xf32>
    %23 = arith.select %20, %18, %22 : vector<4x512xi1>, vector<4x512xf32>
    %c0_21 = arith.constant 0 : index
    %c0_22 = arith.constant 0 : index
    %24 = vector.load %arg2[%c0_21, %c0_22] : memref<16x72xf32, #tpu.memory_space<vmem>>, vector<4x72xf32>
    %c17_i32 = arith.constant 17 : i32
    %25 = tpu.dynamic_rotate %23 by %c17_i32 dim 1 : vector<4x512xf32>, i32 -> vector<4x512xf32>
    %c0_23 = arith.constant 0 : index
    %c0_24 = arith.constant 0 : index
    %26 = vector.load %arg1[%c0_23, %c0_24] : memref<9x512xf32, #tpu.memory_space<vmem>>, vector<1x512xf32>
    %27 = vector.broadcast %26 : vector<1x512xf32> to vector<4x512xf32>
    %28 = arith.mulf %25, %27 : vector<4x512xf32>
    %c0_25 = arith.constant 0 : index
    %c0_26 = arith.constant 0 : index
    %29 = vector.load %arg6[%c0_25, %c0_26] : memref<72x512xf32, #tpu.memory_space<vmem>>, vector<4x512xf32>
    tpu.vector_store %arg6[%c0_25, %c0_26], %28 {strides = array<i32>} : memref<72x512xf32, #tpu.memory_space<vmem>>, vector<4x512xf32>,
    %c16_i32 = arith.constant 16 : i32
    %30 = tpu.dynamic_rotate %23 by %c16_i32 dim 1 : vector<4x512xf32>, i32 -> vector<4x512xf32>
    %c1_27 = arith.constant 1 : index
    %c0_28 = arith.constant 0 : index
    %31 = vector.load %arg1[%c1_27, %c0_28] : memref<9x512xf32, #tpu.memory_space<vmem>>, vector<1x512xf32>
    %32 = vector.broadcast %31 : vector<1x512xf32> to vector<4x512xf32>
    %33 = arith.mulf %30, %32 : vector<4x512xf32>
    %c8 = arith.constant 8 : index
    %c0_29 = arith.constant 0 : index
    %34 = vector.load %arg6[%c8, %c0_29] : memref<72x512xf32, #tpu.memory_space<vmem>>, vector<4x512xf32>
    tpu.vector_store %arg6[%c8, %c0_29], %33 {strides = array<i32>} : memref<72x512xf32, #tpu.memory_space<vmem>>, vector<4x512xf32>,
    %c15_i32 = arith.constant 15 : i32
    %35 = tpu.dynamic_rotate %23 by %c15_i32 dim 1 : vector<4x512xf32>, i32 -> vector<4x512xf32>
    %c2_30 = arith.constant 2 : index
    %c0_31 = arith.constant 0 : index
    %36 = vector.load %arg1[%c2_30, %c0_31] : memref<9x512xf32, #tpu.memory_space<vmem>>, vector<1x512xf32>
    %37 = vector.broadcast %36 : vector<1x512xf32> to vector<4x512xf32>
    %38 = arith.mulf %35, %37 : vector<4x512xf32>
    %c16 = arith.constant 16 : index
    %c0_32 = arith.constant 0 : index
    %39 = vector.load %arg6[%c16, %c0_32] : memref<72x512xf32, #tpu.memory_space<vmem>>, vector<4x512xf32>
    tpu.vector_store %arg6[%c16, %c0_32], %38 {strides = array<i32>} : memref<72x512xf32, #tpu.memory_space<vmem>>, vector<4x512xf32>,
    %c1_i32 = arith.constant 1 : i32
    %40 = tpu.dynamic_rotate %23 by %c1_i32 dim 1 : vector<4x512xf32>, i32 -> vector<4x512xf32>
    %c3_33 = arith.constant 3 : index
    %c0_34 = arith.constant 0 : index
    %41 = vector.load %arg1[%c3_33, %c0_34] : memref<9x512xf32, #tpu.memory_space<vmem>>, vector<1x512xf32>
    %42 = vector.broadcast %41 : vector<1x512xf32> to vector<4x512xf32>
    %43 = arith.mulf %40, %42 : vector<4x512xf32>
    %c24 = arith.constant 24 : index
    %c0_35 = arith.constant 0 : index
    %44 = vector.load %arg6[%c24, %c0_35] : memref<72x512xf32, #tpu.memory_space<vmem>>, vector<4x512xf32>
    tpu.vector_store %arg6[%c24, %c0_35], %43 {strides = array<i32>} : memref<72x512xf32, #tpu.memory_space<vmem>>, vector<4x512xf32>,
    %c32_36 = arith.constant 32 : index
    %c0_37 = arith.constant 0 : index
    %45 = vector.load %arg6[%c32_36, %c0_37] : memref<72x512xf32, #tpu.memory_space<vmem>>, vector<4x512xf32>
    tpu.vector_store %arg6[%c32_36, %c0_37], %23 {strides = array<i32>} : memref<72x512xf32, #tpu.memory_space<vmem>>, vector<4x512xf32>,
    %c511_i32 = arith.constant 511 : i32
    %46 = tpu.dynamic_rotate %23 by %c511_i32 dim 1 : vector<4x512xf32>, i32 -> vector<4x512xf32>
    %c5_38 = arith.constant 5 : index
    %c0_39 = arith.constant 0 : index
    %47 = vector.load %arg1[%c5_38, %c0_39] : memref<9x512xf32, #tpu.memory_space<vmem>>, vector<1x512xf32>
    %48 = vector.broadcast %47 : vector<1x512xf32> to vector<4x512xf32>
    %49 = arith.mulf %46, %48 : vector<4x512xf32>
    %c40 = arith.constant 40 : index
    %c0_40 = arith.constant 0 : index
    %50 = vector.load %arg6[%c40, %c0_40] : memref<72x512xf32, #tpu.memory_space<vmem>>, vector<4x512xf32>
    tpu.vector_store %arg6[%c40, %c0_40], %49 {strides = array<i32>} : memref<72x512xf32, #tpu.memory_space<vmem>>, vector<4x512xf32>,
    %c497_i32 = arith.constant 497 : i32
    %51 = tpu.dynamic_rotate %23 by %c497_i32 dim 1 : vector<4x512xf32>, i32 -> vector<4x512xf32>
    %c6_41 = arith.constant 6 : index
    %c0_42 = arith.constant 0 : index
    %52 = vector.load %arg1[%c6_41, %c0_42] : memref<9x512xf32, #tpu.memory_space<vmem>>, vector<1x512xf32>
    %53 = vector.broadcast %52 : vector<1x512xf32> to vector<4x512xf32>
    %54 = arith.mulf %51, %53 : vector<4x512xf32>
    %c48 = arith.constant 48 : index
    %c0_43 = arith.constant 0 : index
    %55 = vector.load %arg6[%c48, %c0_43] : memref<72x512xf32, #tpu.memory_space<vmem>>, vector<4x512xf32>
    tpu.vector_store %arg6[%c48, %c0_43], %54 {strides = array<i32>} : memref<72x512xf32, #tpu.memory_space<vmem>>, vector<4x512xf32>,
    %c496_i32 = arith.constant 496 : i32
    %56 = tpu.dynamic_rotate %23 by %c496_i32 dim 1 : vector<4x512xf32>, i32 -> vector<4x512xf32>
    %c7_44 = arith.constant 7 : index
    %c0_45 = arith.constant 0 : index
    %57 = vector.load %arg1[%c7_44, %c0_45] : memref<9x512xf32, #tpu.memory_space<vmem>>, vector<1x512xf32>
    %58 = vector.broadcast %57 : vector<1x512xf32> to vector<4x512xf32>
    %59 = arith.mulf %56, %58 : vector<4x512xf32>
    %c56 = arith.constant 56 : index
    %c0_46 = arith.constant 0 : index
    %60 = vector.load %arg6[%c56, %c0_46] : memref<72x512xf32, #tpu.memory_space<vmem>>, vector<4x512xf32>
    tpu.vector_store %arg6[%c56, %c0_46], %59 {strides = array<i32>} : memref<72x512xf32, #tpu.memory_space<vmem>>, vector<4x512xf32>,
    %c495_i32 = arith.constant 495 : i32
    %61 = tpu.dynamic_rotate %23 by %c495_i32 dim 1 : vector<4x512xf32>, i32 -> vector<4x512xf32>
    %c8_47 = arith.constant 8 : index
    %c0_48 = arith.constant 0 : index
    %62 = vector.load %arg1[%c8_47, %c0_48] : memref<9x512xf32, #tpu.memory_space<vmem>>, vector<1x512xf32>
    %63 = vector.broadcast %62 : vector<1x512xf32> to vector<4x512xf32>
    %64 = arith.mulf %61, %63 : vector<4x512xf32>
    %c64 = arith.constant 64 : index
    %c0_49 = arith.constant 0 : index
    %65 = vector.load %arg6[%c64, %c0_49] : memref<72x512xf32, #tpu.memory_space<vmem>>, vector<4x512xf32>
    tpu.vector_store %arg6[%c64, %c0_49], %64 {strides = array<i32>} : memref<72x512xf32, #tpu.memory_space<vmem>>, vector<4x512xf32>,
    %c0_50 = arith.constant 0 : index
    %c0_51 = arith.constant 0 : index
    %66 = vector.load %arg6[%c0_50, %c0_51] : memref<72x512xf32, #tpu.memory_space<vmem>>, vector<72x512xf32>
    %cst_52 = arith.constant dense<0.000000e+00> : vector<4x512xf32>
    %67 = tpu.matmul %24, %66, %cst_52 {dimension_numbers = #tpu.dot_dimension_numbers<[1], [0], [0], [1], [0, 0, 1, 1], [], []>} : vector<4x72xf32>, vector<72x512xf32>, vector<4x512xf32> -> vector<4x512xf32>
    %68 = vector.broadcast %4 : vector<4x1xf32> to vector<4x512xf32>
    %69 = arith.addf %67, %68 : vector<4x512xf32>
    %70 = vector.broadcast %5 : vector<4x1xf32> to vector<4x512xf32>
    %71 = arith.mulf %69, %70 : vector<4x512xf32>
    %72 = vector.broadcast %6 : vector<4x1xf32> to vector<4x512xf32>
    %73 = arith.addf %71, %72 : vector<4x512xf32>
    %cst_53 = arith.constant 0.000000e+00 : f32
    %74 = vector.broadcast %cst_53 : f32 to vector<4x512xf32>
    %75 = arith.cmpf ogt, %73, %74 : vector<4x512xf32>
    %cst_54 = arith.constant 0.00999999977 : f32
    %76 = vector.broadcast %cst_54 : f32 to vector<4x512xf32>
    %77 = arith.mulf %76, %73 : vector<4x512xf32>
    %78 = arith.select %75, %73, %77 : vector<4x512xi1>, vector<4x512xf32>
    %c8_55 = arith.constant 8 : index
    %c0_56 = arith.constant 0 : index
    %79 = vector.load %arg2[%c8_55, %c0_56] : memref<16x72xf32, #tpu.memory_space<vmem>>, vector<4x72xf32>
    %c17_i32_57 = arith.constant 17 : i32
    %80 = tpu.dynamic_rotate %78 by %c17_i32_57 dim 1 : vector<4x512xf32>, i32 -> vector<4x512xf32>
    %c0_58 = arith.constant 0 : index
    %c0_59 = arith.constant 0 : index
    %81 = vector.load %arg1[%c0_58, %c0_59] : memref<9x512xf32, #tpu.memory_space<vmem>>, vector<1x512xf32>
    %82 = vector.broadcast %81 : vector<1x512xf32> to vector<4x512xf32>
    %83 = arith.mulf %80, %82 : vector<4x512xf32>
    %c0_60 = arith.constant 0 : index
    %c0_61 = arith.constant 0 : index
    %84 = vector.load %arg6[%c0_60, %c0_61] : memref<72x512xf32, #tpu.memory_space<vmem>>, vector<4x512xf32>
    tpu.vector_store %arg6[%c0_60, %c0_61], %83 {strides = array<i32>} : memref<72x512xf32, #tpu.memory_space<vmem>>, vector<4x512xf32>,
    %c16_i32_62 = arith.constant 16 : i32
    %85 = tpu.dynamic_rotate %78 by %c16_i32_62 dim 1 : vector<4x512xf32>, i32 -> vector<4x512xf32>
    %c1_63 = arith.constant 1 : index
    %c0_64 = arith.constant 0 : index
    %86 = vector.load %arg1[%c1_63, %c0_64] : memref<9x512xf32, #tpu.memory_space<vmem>>, vector<1x512xf32>
    %87 = vector.broadcast %86 : vector<1x512xf32> to vector<4x512xf32>
    %88 = arith.mulf %85, %87 : vector<4x512xf32>
    %c8_65 = arith.constant 8 : index
    %c0_66 = arith.constant 0 : index
    %89 = vector.load %arg6[%c8_65, %c0_66] : memref<72x512xf32, #tpu.memory_space<vmem>>, vector<4x512xf32>
    tpu.vector_store %arg6[%c8_65, %c0_66], %88 {strides = array<i32>} : memref<72x512xf32, #tpu.memory_space<vmem>>, vector<4x512xf32>,
    %c15_i32_67 = arith.constant 15 : i32
    %90 = tpu.dynamic_rotate %78 by %c15_i32_67 dim 1 : vector<4x512xf32>, i32 -> vector<4x512xf32>
    %c2_68 = arith.constant 2 : index
    %c0_69 = arith.constant 0 : index
    %91 = vector.load %arg1[%c2_68, %c0_69] : memref<9x512xf32, #tpu.memory_space<vmem>>, vector<1x512xf32>
    %92 = vector.broadcast %91 : vector<1x512xf32> to vector<4x512xf32>
    %93 = arith.mulf %90, %92 : vector<4x512xf32>
    %c16_70 = arith.constant 16 : index
    %c0_71 = arith.constant 0 : index
    %94 = vector.load %arg6[%c16_70, %c0_71] : memref<72x512xf32, #tpu.memory_space<vmem>>, vector<4x512xf32>
    tpu.vector_store %arg6[%c16_70, %c0_71], %93 {strides = array<i32>} : memref<72x512xf32, #tpu.memory_space<vmem>>, vector<4x512xf32>,
    %c1_i32_72 = arith.constant 1 : i32
    %95 = tpu.dynamic_rotate %78 by %c1_i32_72 dim 1 : vector<4x512xf32>, i32 -> vector<4x512xf32>
    %c3_73 = arith.constant 3 : index
    %c0_74 = arith.constant 0 : index
    %96 = vector.load %arg1[%c3_73, %c0_74] : memref<9x512xf32, #tpu.memory_space<vmem>>, vector<1x512xf32>
    %97 = vector.broadcast %96 : vector<1x512xf32> to vector<4x512xf32>
    %98 = arith.mulf %95, %97 : vector<4x512xf32>
    %c24_75 = arith.constant 24 : index
    %c0_76 = arith.constant 0 : index
    %99 = vector.load %arg6[%c24_75, %c0_76] : memref<72x512xf32, #tpu.memory_space<vmem>>, vector<4x512xf32>
    tpu.vector_store %arg6[%c24_75, %c0_76], %98 {strides = array<i32>} : memref<72x512xf32, #tpu.memory_space<vmem>>, vector<4x512xf32>,
    %c32_77 = arith.constant 32 : index
    %c0_78 = arith.constant 0 : index
    %100 = vector.load %arg6[%c32_77, %c0_78] : memref<72x512xf32, #tpu.memory_space<vmem>>, vector<4x512xf32>
    tpu.vector_store %arg6[%c32_77, %c0_78], %78 {strides = array<i32>} : memref<72x512xf32, #tpu.memory_space<vmem>>, vector<4x512xf32>,
    %c511_i32_79 = arith.constant 511 : i32
    %101 = tpu.dynamic_rotate %78 by %c511_i32_79 dim 1 : vector<4x512xf32>, i32 -> vector<4x512xf32>
    %c5_80 = arith.constant 5 : index
    %c0_81 = arith.constant 0 : index
    %102 = vector.load %arg1[%c5_80, %c0_81] : memref<9x512xf32, #tpu.memory_space<vmem>>, vector<1x512xf32>
    %103 = vector.broadcast %102 : vector<1x512xf32> to vector<4x512xf32>
    %104 = arith.mulf %101, %103 : vector<4x512xf32>
    %c40_82 = arith.constant 40 : index
    %c0_83 = arith.constant 0 : index
    %105 = vector.load %arg6[%c40_82, %c0_83] : memref<72x512xf32, #tpu.memory_space<vmem>>, vector<4x512xf32>
    tpu.vector_store %arg6[%c40_82, %c0_83], %104 {strides = array<i32>} : memref<72x512xf32, #tpu.memory_space<vmem>>, vector<4x512xf32>,
    %c497_i32_84 = arith.constant 497 : i32
    %106 = tpu.dynamic_rotate %78 by %c497_i32_84 dim 1 : vector<4x512xf32>, i32 -> vector<4x512xf32>
    %c6_85 = arith.constant 6 : index
    %c0_86 = arith.constant 0 : index
    %107 = vector.load %arg1[%c6_85, %c0_86] : memref<9x512xf32, #tpu.memory_space<vmem>>, vector<1x512xf32>
    %108 = vector.broadcast %107 : vector<1x512xf32> to vector<4x512xf32>
    %109 = arith.mulf %106, %108 : vector<4x512xf32>
    %c48_87 = arith.constant 48 : index
    %c0_88 = arith.constant 0 : index
    %110 = vector.load %arg6[%c48_87, %c0_88] : memref<72x512xf32, #tpu.memory_space<vmem>>, vector<4x512xf32>
    tpu.vector_store %arg6[%c48_87, %c0_88], %109 {strides = array<i32>} : memref<72x512xf32, #tpu.memory_space<vmem>>, vector<4x512xf32>,
    %c496_i32_89 = arith.constant 496 : i32
    %111 = tpu.dynamic_rotate %78 by %c496_i32_89 dim 1 : vector<4x512xf32>, i32 -> vector<4x512xf32>
    %c7_90 = arith.constant 7 : index
    %c0_91 = arith.constant 0 : index
    %112 = vector.load %arg1[%c7_90, %c0_91] : memref<9x512xf32, #tpu.memory_space<vmem>>, vector<1x512xf32>
    %113 = vector.broadcast %112 : vector<1x512xf32> to vector<4x512xf32>
    %114 = arith.mulf %111, %113 : vector<4x512xf32>
    %c56_92 = arith.constant 56 : index
    %c0_93 = arith.constant 0 : index
    %115 = vector.load %arg6[%c56_92, %c0_93] : memref<72x512xf32, #tpu.memory_space<vmem>>, vector<4x512xf32>
    tpu.vector_store %arg6[%c56_92, %c0_93], %114 {strides = array<i32>} : memref<72x512xf32, #tpu.memory_space<vmem>>, vector<4x512xf32>,
    %c495_i32_94 = arith.constant 495 : i32
    %116 = tpu.dynamic_rotate %78 by %c495_i32_94 dim 1 : vector<4x512xf32>, i32 -> vector<4x512xf32>
    %c8_95 = arith.constant 8 : index
    %c0_96 = arith.constant 0 : index
    %117 = vector.load %arg1[%c8_95, %c0_96] : memref<9x512xf32, #tpu.memory_space<vmem>>, vector<1x512xf32>
    %118 = vector.broadcast %117 : vector<1x512xf32> to vector<4x512xf32>
    %119 = arith.mulf %116, %118 : vector<4x512xf32>
    %c64_97 = arith.constant 64 : index
    %c0_98 = arith.constant 0 : index
    %120 = vector.load %arg6[%c64_97, %c0_98] : memref<72x512xf32, #tpu.memory_space<vmem>>, vector<4x512xf32>
    tpu.vector_store %arg6[%c64_97, %c0_98], %119 {strides = array<i32>} : memref<72x512xf32, #tpu.memory_space<vmem>>, vector<4x512xf32>,
    %c0_99 = arith.constant 0 : index
    %c0_100 = arith.constant 0 : index
    %121 = vector.load %arg6[%c0_99, %c0_100] : memref<72x512xf32, #tpu.memory_space<vmem>>, vector<72x512xf32>
    %cst_101 = arith.constant dense<0.000000e+00> : vector<4x512xf32>
    %122 = tpu.matmul %79, %121, %cst_101 {dimension_numbers = #tpu.dot_dimension_numbers<[1], [0], [0], [1], [0, 0, 1, 1], [], []>} : vector<4x72xf32>, vector<72x512xf32>, vector<4x512xf32> -> vector<4x512xf32>
    %123 = vector.broadcast %7 : vector<4x1xf32> to vector<4x512xf32>
    %124 = arith.addf %122, %123 : vector<4x512xf32>
    %125 = arith.addf %124, %0 : vector<4x512xf32>
    %126 = vector.extract_strided_slice %125 {offsets = [0, 0], sizes = [4, 256], strides = [1, 1]} : vector<4x512xf32> to vector<4x256xf32>
    %cst_102 = arith.constant dense<0.000000e+00> : vector<4xf32>
    %127 = vector.multi_reduction <add>, %126, %cst_102 [1] : vector<4x256xf32> to vector<4xf32>
    %128 = vector.shape_cast %127 : vector<4xf32> to vector<4x1xf32>
    %c0_103 = arith.constant 0 : index
    %c0_104 = arith.constant 0 : index
    %129 = vector.load %arg7[%c0_103, %c0_104] : memref<4x2xf32, #tpu.memory_space<vmem>>, vector<4x1xf32>
    tpu.vector_store %arg7[%c0_103, %c0_104], %128 {strides = array<i32>} : memref<4x2xf32, #tpu.memory_space<vmem>>, vector<4x1xf32>,
    %130 = vector.extract_strided_slice %125 {offsets = [0, 256], sizes = [4, 256], strides = [1, 1]} : vector<4x512xf32> to vector<4x256xf32>
    %cst_105 = arith.constant dense<0.000000e+00> : vector<4xf32>
    %131 = vector.multi_reduction <add>, %130, %cst_105 [1] : vector<4x256xf32> to vector<4xf32>
    %132 = vector.shape_cast %131 : vector<4xf32> to vector<4x1xf32>
    %c0_106 = arith.constant 0 : index
    %c1_107 = arith.constant 1 : index
    %133 = vector.load %arg7[%c0_106, %c1_107] : memref<4x2xf32, #tpu.memory_space<vmem>>, vector<4x1xf32>
    tpu.vector_store %arg7[%c0_106, %c1_107], %132 {strides = array<i32>} : memref<4x2xf32, #tpu.memory_space<vmem>>, vector<4x1xf32>,
    %c0_108 = arith.constant 0 : index
    %c0_109 = arith.constant 0 : index
    %134 = vector.load %arg7[%c0_108, %c0_109] : memref<4x2xf32, #tpu.memory_space<vmem>>, vector<4x2xf32>
    %cst_110 = arith.constant 3.906250e-03 : f32
    %135 = vector.broadcast %cst_110 : f32 to vector<4x2xf32>
    %136 = arith.mulf %134, %135 : vector<4x2xf32>
    %cst_111 = arith.constant dense<0.000000e+00> : vector<2xf32>
    %137 = vector.multi_reduction <add>, %136, %cst_111 [0] : vector<4x2xf32> to vector<2xf32>
    %138 = vector.shape_cast %137 : vector<2xf32> to vector<1x2xf32>
    %139 = arith.addf %138, %1 : vector<1x2xf32>
    %cst_112 = arith.constant 5.000000e+00 : f32
    %140 = vector.broadcast %cst_112 : f32 to vector<1x2xf32>
    %141 = arith.divf %139, %140 : vector<1x2xf32>
    %142 = vector.broadcast %141 : vector<1x2xf32> to vector<4x2xf32>
    %143 = arith.subf %136, %142 : vector<4x2xf32>
    %144 = arith.subf %1, %141 : vector<1x2xf32>
    %145 = arith.mulf %143, %143 : vector<4x2xf32>
    %cst_113 = arith.constant dense<0.000000e+00> : vector<2xf32>
    %146 = vector.multi_reduction <add>, %145, %cst_113 [0] : vector<4x2xf32> to vector<2xf32>
    %147 = vector.shape_cast %146 : vector<2xf32> to vector<1x2xf32>
    %148 = arith.mulf %144, %144 : vector<1x2xf32>
    %149 = arith.addf %147, %148 : vector<1x2xf32>
    %cst_114 = arith.constant 5.000000e+00 : f32
    %150 = vector.broadcast %cst_114 : f32 to vector<1x2xf32>
    %151 = arith.divf %149, %150 : vector<1x2xf32>
    %cst_115 = arith.constant 9.99999974E-6 : f32
    %152 = vector.broadcast %cst_115 : f32 to vector<1x2xf32>
    %153 = arith.addf %151, %152 : vector<1x2xf32>
    %154 = math.rsqrt %153 : vector<1x2xf32>
    %155 = vector.broadcast %154 : vector<1x2xf32> to vector<4x2xf32>
    %156 = arith.mulf %143, %155 : vector<4x2xf32>
    %157 = arith.mulf %144, %154 : vector<1x2xf32>
    %cst_116 = arith.constant dense<0.000000e+00> : vector<32x2xf32>
    %158 = tpu.matmul %10, %156, %cst_116 {dimension_numbers = #tpu.dot_dimension_numbers<[1], [0], [0], [1], [0, 0, 1, 1], [], []>} : vector<32x4xf32>, vector<4x2xf32>, vector<32x2xf32> -> vector<32x2xf32>
    %159 = vector.broadcast %11 : vector<32x1xf32> to vector<32x2xf32>
    %160 = vector.broadcast %157 : vector<1x2xf32> to vector<32x2xf32>
    %161 = arith.mulf %159, %160 : vector<32x2xf32>
    %162 = arith.addf %158, %161 : vector<32x2xf32>
    %163 = vector.broadcast %8 : vector<32x1xf32> to vector<32x2xf32>
    %164 = arith.addf %162, %163 : vector<32x2xf32>
    %cst_117 = arith.constant 0.000000e+00 : f32
    %165 = vector.broadcast %cst_117 : f32 to vector<32x2xf32>
    %166 = arith.cmpf ogt, %164, %165 : vector<32x2xf32>
    %cst_118 = arith.constant 0.00999999977 : f32
    %167 = vector.broadcast %cst_118 : f32 to vector<32x2xf32>
    %168 = arith.mulf %167, %164 : vector<32x2xf32>
    %169 = arith.select %166, %164, %168 : vector<32x2xi1>, vector<32x2xf32>
    %170 = vector.extract_strided_slice %169 {offsets = [0, 0], sizes = [16, 2], strides = [1, 1]} : vector<32x2xf32> to vector<16x2xf32>
    %cst_119 = arith.constant dense<0.000000e+00> : vector<2xf32>
    %171 = vector.multi_reduction <add>, %170, %cst_119 [0] : vector<16x2xf32> to vector<2xf32>
    %172 = vector.shape_cast %171 : vector<2xf32> to vector<1x2xf32>
    %cst_120 = arith.constant 1.600000e+01 : f32
    %173 = vector.broadcast %cst_120 : f32 to vector<1x2xf32>
    %174 = arith.divf %172, %173 : vector<1x2xf32>
    %175 = vector.broadcast %174 : vector<1x2xf32> to vector<16x2xf32>
    %176 = arith.subf %170, %175 : vector<16x2xf32>
    %177 = arith.mulf %176, %176 : vector<16x2xf32>
    %cst_121 = arith.constant dense<0.000000e+00> : vector<2xf32>
    %178 = vector.multi_reduction <add>, %177, %cst_121 [0] : vector<16x2xf32> to vector<2xf32>
    %179 = vector.shape_cast %178 : vector<2xf32> to vector<1x2xf32>
    %cst_122 = arith.constant 1.600000e+01 : f32
    %180 = vector.broadcast %cst_122 : f32 to vector<1x2xf32>
    %181 = arith.divf %179, %180 : vector<1x2xf32>
    %cst_123 = arith.constant 9.99999974E-6 : f32
    %182 = vector.broadcast %cst_123 : f32 to vector<1x2xf32>
    %183 = arith.addf %181, %182 : vector<1x2xf32>
    %184 = math.rsqrt %183 : vector<1x2xf32>
    %185 = vector.broadcast %184 : vector<1x2xf32> to vector<16x2xf32>
    %186 = arith.mulf %176, %185 : vector<16x2xf32>
    %c0_124 = arith.constant 0 : index
    %c0_125 = arith.constant 0 : index
    %187 = vector.load %arg8[%c0_124, %c0_125] : memref<32x2xf32, #tpu.memory_space<vmem>>, vector<16x2xf32>
    tpu.vector_store %arg8[%c0_124, %c0_125], %186 {strides = array<i32>} : memref<32x2xf32, #tpu.memory_space<vmem>>, vector<16x2xf32>,
    %188 = vector.extract_strided_slice %169 {offsets = [16, 0], sizes = [16, 2], strides = [1, 1]} : vector<32x2xf32> to vector<16x2xf32>
    %cst_126 = arith.constant dense<0.000000e+00> : vector<2xf32>
    %189 = vector.multi_reduction <add>, %188, %cst_126 [0] : vector<16x2xf32> to vector<2xf32>
    %190 = vector.shape_cast %189 : vector<2xf32> to vector<1x2xf32>
    %cst_127 = arith.constant 1.600000e+01 : f32
    %191 = vector.broadcast %cst_127 : f32 to vector<1x2xf32>
    %192 = arith.divf %190, %191 : vector<1x2xf32>
    %193 = vector.broadcast %192 : vector<1x2xf32> to vector<16x2xf32>
    %194 = arith.subf %188, %193 : vector<16x2xf32>
    %195 = arith.mulf %194, %194 : vector<16x2xf32>
    %cst_128 = arith.constant dense<0.000000e+00> : vector<2xf32>
    %196 = vector.multi_reduction <add>, %195, %cst_128 [0] : vector<16x2xf32> to vector<2xf32>
    %197 = vector.shape_cast %196 : vector<2xf32> to vector<1x2xf32>
    %cst_129 = arith.constant 1.600000e+01 : f32
    %198 = vector.broadcast %cst_129 : f32 to vector<1x2xf32>
    %199 = arith.divf %197, %198 : vector<1x2xf32>
    %cst_130 = arith.constant 9.99999974E-6 : f32
    %200 = vector.broadcast %cst_130 : f32 to vector<1x2xf32>
    %201 = arith.addf %199, %200 : vector<1x2xf32>
    %202 = math.rsqrt %201 : vector<1x2xf32>
    %203 = vector.broadcast %202 : vector<1x2xf32> to vector<16x2xf32>
    %204 = arith.mulf %194, %203 : vector<16x2xf32>
    %c16_131 = arith.constant 16 : index
    %c0_132 = arith.constant 0 : index
    %205 = vector.load %arg8[%c16_131, %c0_132] : memref<32x2xf32, #tpu.memory_space<vmem>>, vector<16x2xf32>
    tpu.vector_store %arg8[%c16_131, %c0_132], %204 {strides = array<i32>} : memref<32x2xf32, #tpu.memory_space<vmem>>, vector<16x2xf32>,
    %c0_133 = arith.constant 0 : index
    %c0_134 = arith.constant 0 : index
    %206 = vector.load %arg8[%c0_133, %c0_134] : memref<32x2xf32, #tpu.memory_space<vmem>>, vector<32x2xf32>
    %cst_135 = arith.constant dense<0.000000e+00> : vector<11x2xf32>
    %207 = tpu.matmul %12, %206, %cst_135 {dimension_numbers = #tpu.dot_dimension_numbers<[1], [0], [0], [1], [0, 0, 1, 1], [], []>} : vector<11x32xf32>, vector<32x2xf32>, vector<11x2xf32> -> vector<11x2xf32>
    %208 = vector.broadcast %9 : vector<11x1xf32> to vector<11x2xf32>
    %209 = arith.addf %207, %208 : vector<11x2xf32>
    %cst_136 = arith.constant 0.000000e+00 : f32
    %210 = vector.broadcast %cst_136 : f32 to vector<11x2xf32>
    %211 = arith.subf %210, %209 : vector<11x2xf32>
    %212 = math.exp %211 : vector<11x2xf32>
    %cst_137 = arith.constant 1.000000e+00 : f32
    %213 = vector.broadcast %cst_137 : f32 to vector<11x2xf32>
    %214 = arith.addf %213, %212 : vector<11x2xf32>
    %cst_138 = arith.constant 1.000000e+00 : f32
    %215 = vector.broadcast %cst_138 : f32 to vector<11x2xf32>
    %216 = arith.divf %215, %214 : vector<11x2xf32>
    %217 = tpu.iota {dimensions = array<i32: 0>} : vector<11x2xi32>
    %c10_i32 = arith.constant 10 : i32
    %218 = vector.broadcast %c10_i32 : i32 to vector<11x2xi32>
    %219 = arith.cmpi eq, %217, %218 : vector<11x2xi32>
    %220 = arith.select %219, %216, %209 : vector<11x2xi1>, vector<11x2xf32>
    %c0_139 = arith.constant 0 : index
    %c0_140 = arith.constant 0 : index
    %221 = vector.load %arg5[%c0_139, %c0_140] : memref<11x2xf32, #tpu.memory_space<vmem>>, vector<11x2xf32>
    tpu.vector_store %arg5[%c0_139, %c0_140], %220 {strides = array<i32>} : memref<11x2xf32, #tpu.memory_space<vmem>>, vector<11x2xf32>,
    return
  }
}

</mosaic_0001>

<llo_original>
// kernel: net_forward.1
$region0: #{net_forward.1}
  #allocation0 [shape = 'u32[]', space=smem, size = 0x4, offset = 0x4, fixed_abs, tag = 'smem constant byte address 0x4 - core index']
  #allocation1 [shape = 'u32[72,128]{1,0:T(1,128)}', space=vmem, size = 0x9000, scoped, tag = 'internal scratch']
  #allocation2 [shape = 'f32[72,512]{1,0:T(8,128)}', space=vmem, size = 0x24000, scoped, tag = 'scratch operand']
  #allocation3 [shape = 'f32[4,2]{1,0:T(4,128)}', space=vmem, size = 0x800, scoped, tag = 'scratch operand']
  #allocation4 [shape = 'f32[32,2]{1,0:T(8,128)}', space=vmem, size = 0x4000, scoped, tag = 'scratch operand']
  %s0 = inlined_call_operand.vmem [shape: f32[5,512], index: 0, kind: input, shape index: {}]
  %s1 = inlined_call_operand.vmem [shape: f32[9,512], index: 1, kind: input, shape index: {}]
  %s2 = inlined_call_operand.vmem [shape: f32[16,72], index: 2, kind: input, shape index: {}]
  %s3 = inlined_call_operand.vmem [shape: f32[43,32], index: 3, kind: input, shape index: {}]
  %s4 = inlined_call_operand.vmem [shape: f32[32,8], index: 4, kind: input, shape index: {}]
  %s5 = inlined_call_operand.vmem [shape: f32[11,2], index: 5, kind: output, shape index: {}]
  %s6 = sld [smem:[#allocation0]]
  $region30: #{net_forward.1} parent=0
    _
  %s8 = ssub.s32 1, %s6
  %s9 = scalar_select 0, %s8, %s6
  // Predicated region
  $region2: #{net_forward.1} parent=0 // pred_check
    _
  $region3: #{net_forward.1} parent=0 // pred_check_branch
    %11 = sbr.rel (0) target = $region5
  $region4: #{net_forward.1} parent=0 // pred_region
    _
  $region5: #{net_forward.1} parent=0 // pred_fallthru
    _
  // Predicated region
  $region6: #{net_forward.1} parent=0 // pred_check
    _
  $region7: #{net_forward.1} parent=0 // pred_check_branch
    %13 = sbr.rel (0) target = $region9
  $region8: #{net_forward.1} parent=0 // pred_region
    _
  $region9: #{net_forward.1} parent=0 // pred_fallthru
    _
  // Predicated region
  $region10: #{net_forward.1} parent=0 // pred_check
    _
  $region11: #{net_forward.1} parent=0 // pred_check_branch
    %15 = sbr.rel (0) target = $region13
  $region12: #{net_forward.1} parent=0 // pred_region
    _
  $region13: #{net_forward.1} parent=0 // pred_fallthru
    _
  // Predicated region
  $region14: #{net_forward.1} parent=0 // pred_check
    _
  $region15: #{net_forward.1} parent=0 // pred_check_branch
    %17 = sbr.rel (0) target = $region17
  $region16: #{net_forward.1} parent=0 // pred_region
    _
  $region17: #{net_forward.1} parent=0 // pred_fallthru
    _
  // Predicated region
  $region18: #{net_forward.1} parent=0 // pred_check
    _
  $region19: #{net_forward.1} parent=0 // pred_check_branch
    %19 = sbr.rel (0) target = $region21
  $region20: #{net_forward.1} parent=0 // pred_region
    _
  $region21: #{net_forward.1} parent=0 // pred_fallthru
    _
  %v20 = vld [vmem:[%s0] sm:$0xf]
  %v21 = vld [vmem:[%s0 + $0x8] sm:$0xf]
  %v22 = vld [vmem:[%s0 + $0x10] sm:$0xf]
  %v23 = vld [vmem:[%s0 + $0x18] sm:$0xf]
  %v24 = vld [vmem:[%s0 + $0x4] ss:$0 sm:$0xff]
  %v25 = vld [vmem:[%s4] sm:$0xf]
  %v26 = vld [vmem:[%s4] sm:$0xff]
  %v27 = vld [vmem:[%s4 + $0x8] sm:$0xff]
  %v28 = vld [vmem:[%s4 + $0x10] sm:$0xff]
  %v29 = vld [vmem:[%s4 + $0x18] sm:$0xff]
  %v30 = vld [vmem:[%s4 + $0x8] sm:$0x7]
  %v31 = vld [vmem:[%s3] sm:$0xff]
  %v32 = vld [vmem:[%s3 + $0x8] sm:$0xff]
  %v33 = vld [vmem:[%s3 + $0x10] sm:$0xff]
  %v34 = vld [vmem:[%s3 + $0x18] sm:$0xff]
  %v35 = vld [vmem:[%s3 + $0x20] sm:$0xff]
  %v36 = vld [vmem:[%s3 + $0x28] sm:$0x7]
  %37 = vst [vmem:[#allocation2] sm:$0xff] 0.0
  %38 = vst [vmem:[#allocation2 + $0x8] sm:$0xff] 0.0
  %39 = vst [vmem:[#allocation2 + $0x10] sm:$0xff] 0.0
  %40 = vst [vmem:[#allocation2 + $0x18] sm:$0xff] 0.0
  %41 = vst [vmem:[#allocation2 + $0x20] sm:$0xff] 0.0
  %42 = vst [vmem:[#allocation2 + $0x28] sm:$0xff] 0.0
  %43 = vst [vmem:[#allocation2 + $0x30] sm:$0xff] 0.0
  %44 = vst [vmem:[#allocation2 + $0x38] sm:$0xff] 0.0
  %45 = vst [vmem:[#allocation2 + $0x40] sm:$0xff] 0.0
  %46 = vst [vmem:[#allocation2 + $0x48] sm:$0xff] 0.0
  %47 = vst [vmem:[#allocation2 + $0x50] sm:$0xff] 0.0
  %48 = vst [vmem:[#allocation2 + $0x58] sm:$0xff] 0.0
  %49 = vst [vmem:[#allocation2 + $0x60] sm:$0xff] 0.0
  %50 = vst [vmem:[#allocation2 + $0x68] sm:$0xff] 0.0
  %51 = vst [vmem:[#allocation2 + $0x70] sm:$0xff] 0.0
  %52 = vst [vmem:[#allocation2 + $0x78] sm:$0xff] 0.0
  %53 = vst [vmem:[#allocation2 + $0x80] sm:$0xff] 0.0
  %54 = vst [vmem:[#allocation2 + $0x88] sm:$0xff] 0.0
  %55 = vst [vmem:[#allocation2 + $0x90] sm:$0xff] 0.0
  %56 = vst [vmem:[#allocation2 + $0x98] sm:$0xff] 0.0
  %57 = vst [vmem:[#allocation2 + $0xa0] sm:$0xff] 0.0
  %58 = vst [vmem:[#allocation2 + $0xa8] sm:$0xff] 0.0
  %59 = vst [vmem:[#allocation2 + $0xb0] sm:$0xff] 0.0
  %60 = vst [vmem:[#allocation2 + $0xb8] sm:$0xff] 0.0
  %61 = vst [vmem:[#allocation2 + $0xc0] sm:$0xff] 0.0
  %62 = vst [vmem:[#allocation2 + $0xc8] sm:$0xff] 0.0
  %63 = vst [vmem:[#allocation2 + $0xd0] sm:$0xff] 0.0
  %64 = vst [vmem:[#allocation2 + $0xd8] sm:$0xff] 0.0
  %65 = vst [vmem:[#allocation2 + $0xe0] sm:$0xff] 0.0
  %66 = vst [vmem:[#allocation2 + $0xe8] sm:$0xff] 0.0
  %67 = vst [vmem:[#allocation2 + $0xf0] sm:$0xff] 0.0
  %68 = vst [vmem:[#allocation2 + $0xf8] sm:$0xff] 0.0
  %69 = vst [vmem:[#allocation2 + $0x100] sm:$0xff] 0.0
  %70 = vst [vmem:[#allocation2 + $0x108] sm:$0xff] 0.0
  %71 = vst [vmem:[#allocation2 + $0x110] sm:$0xff] 0.0
  %72 = vst [vmem:[#allocation2 + $0x118] sm:$0xff] 0.0
  %74 = vset.pattern.permute.xlu0 0
  %75 = vperm.xlu0 %74, %v25
  %v76 = vpop.permute.xlu0 %75
  %v78 = vmul.f32 %v20, %v76
  %v79 = vmul.f32 %v21, %v76
  %v80 = vmul.f32 %v22, %v76
  %v81 = vmul.f32 %v23, %v76
  %82 = vset.pattern.permute.xlu0 1
  %83 = vperm.xlu0 %82, %v25
  %v84 = vpop.permute.xlu0 %83
  %v86 = vadd.f32 %v78, %v84
  %v87 = vadd.f32 %v79, %v84
  %v88 = vadd.f32 %v80, %v84
  %v89 = vadd.f32 %v81, %v84
  %vm90 = vcmp.gt.f32.partialorder %v86, 0.0
  %vm91 = vcmp.gt.f32.partialorder %v87, 0.0
  %vm92 = vcmp.gt.f32.partialorder %v88, 0.0
  %vm93 = vcmp.gt.f32.partialorder %v89, 0.0
  %v94 = vmul.f32 %v86, 0.01
  %v95 = vmul.f32 %v87, 0.01
  %v96 = vmul.f32 %v88, 0.01
  %v97 = vmul.f32 %v89, 0.01
  %v98 = vsel %vm90, %v86, %v94
  %v99 = vsel %vm91, %v87, %v95
  %v100 = vsel %vm92, %v88, %v96
  %v101 = vsel %vm93, %v89, %v97
  %v102 = vld [vmem:[%s2] sm:$0xf]
  %103 = vrot.lane.b32.xlu0 %v98, 17
  %v104 = vpop.permute.xlu0 %103
  %105 = vrot.lane.b32.xlu0 %v99, 17
  %v106 = vpop.permute.xlu0 %105
  %107 = vrot.lane.b32.xlu0 %v100, 17
  %v108 = vpop.permute.xlu0 %107
  %109 = vrot.lane.b32.xlu0 %v101, 17
  %v110 = vpop.permute.xlu0 %109
  %v111 = vlaneseq
  %v112 = vand.u32 %v111, 127
  %vm113 = vcmp.lt.s32.totalorder %v112, 17
  %v114 = vsel %vm113, %v108, %v110
  %v115 = vsel %vm113, %v106, %v108
  %v116 = vsel %vm113, %v104, %v106
  %v117 = vsel %vm113, %v110, %v104
  %v118 = vld [vmem:[%s1] ss:$8 sm:$0xf]
  %v120 = vperm.slane %v118, 0
  %v121 = vperm.slane %v118, 1
  %v122 = vperm.slane %v118, 2
  %v123 = vperm.slane %v118, 3
  %v128 = vmul.f32 %v117, %v120
  %v129 = vmul.f32 %v116, %v121
  %v130 = vmul.f32 %v115, %v122
  %v131 = vmul.f32 %v114, %v123
  %132 = vst [vmem:[#allocation2] sm:$0xf] %v128
  %133 = vst [vmem:[#allocation2 + $0x8] sm:$0xf] %v129
  %134 = vst [vmem:[#allocation2 + $0x10] sm:$0xf] %v130
  %135 = vst [vmem:[#allocation2 + $0x18] sm:$0xf] %v131
  %136 = vrot.lane.b32.xlu0 %v98, 16
  %v137 = vpop.permute.xlu0 %136
  %138 = vrot.lane.b32.xlu0 %v99, 16
  %v139 = vpop.permute.xlu0 %138
  %140 = vrot.lane.b32.xlu0 %v100, 16
  %v141 = vpop.permute.xlu0 %140
  %142 = vrot.lane.b32.xlu0 %v101, 16
  %v143 = vpop.permute.xlu0 %142
  %vm144 = vcmp.lt.s32.totalorder %v112, 16
  %v145 = vsel %vm144, %v141, %v143
  %v146 = vsel %vm144, %v139, %v141
  %v147 = vsel %vm144, %v137, %v139
  %v148 = vsel %vm144, %v143, %v137
  %s149 = scalar_lea.vmem %s1, 1
  %v150 = vld [vmem:[%s149] ss:$8 sm:$0xf]
  %v152 = vperm.slane %v150, 0
  %v153 = vperm.slane %v150, 1
  %v154 = vperm.slane %v150, 2
  %v155 = vperm.slane %v150, 3
  %v160 = vmul.f32 %v148, %v152
  %v161 = vmul.f32 %v147, %v153
  %v162 = vmul.f32 %v146, %v154
  %v163 = vmul.f32 %v145, %v155
  %164 = vst [vmem:[#allocation2 + $0x20] sm:$0xf] %v160
  %165 = vst [vmem:[#allocation2 + $0x28] sm:$0xf] %v161
  %166 = vst [vmem:[#allocation2 + $0x30] sm:$0xf] %v162
  %167 = vst [vmem:[#allocation2 + $0x38] sm:$0xf] %v163
  %168 = vrot.lane.b32.xlu0 %v98, 15
  %v169 = vpop.permute.xlu0 %168
  %170 = vrot.lane.b32.xlu0 %v99, 15
  %v171 = vpop.permute.xlu0 %170
  %172 = vrot.lane.b32.xlu0 %v100, 15
  %v173 = vpop.permute.xlu0 %172
  %174 = vrot.lane.b32.xlu0 %v101, 15
  %v175 = vpop.permute.xlu0 %174
  %vm176 = vcmp.lt.s32.totalorder %v112, 15
  %v177 = vsel %vm176, %v173, %v175
  %v178 = vsel %vm176, %v171, %v173
  %v179 = vsel %vm176, %v169, %v171
  %v180 = vsel %vm176, %v175, %v169
  %s181 = scalar_lea.vmem %s1, 2
  %v182 = vld [vmem:[%s181] ss:$8 sm:$0xf]
  %v184 = vperm.slane %v182, 0
  %v185 = vperm.slane %v182, 1
  %v186 = vperm.slane %v182, 2
  %v187 = vperm.slane %v182, 3
  %v192 = vmul.f32 %v180, %v184
  %v193 = vmul.f32 %v179, %v185
  %v194 = vmul.f32 %v178, %v186
  %v195 = vmul.f32 %v177, %v187
  %196 = vst [vmem:[#allocation2 + $0x40] sm:$0xf] %v192
  %197 = vst [vmem:[#allocation2 + $0x48] sm:$0xf] %v193
  %198 = vst [vmem:[#allocation2 + $0x50] sm:$0xf] %v194
  %199 = vst [vmem:[#allocation2 + $0x58] sm:$0xf] %v195
  %200 = vrot.lane.b32.xlu0 %v98, 1
  %v201 = vpop.permute.xlu0 %200
  %202 = vrot.lane.b32.xlu0 %v99, 1
  %v203 = vpop.permute.xlu0 %202
  %204 = vrot.lane.b32.xlu0 %v100, 1
  %v205 = vpop.permute.xlu0 %204
  %206 = vrot.lane.b32.xlu0 %v101, 1
  %v207 = vpop.permute.xlu0 %206
  %vm208 = vcmp.lt.s32.totalorder %v112, 1
  %v209 = vsel %vm208, %v205, %v207
  %v210 = vsel %vm208, %v203, %v205
  %v211 = vsel %vm208, %v201, %v203
  %v212 = vsel %vm208, %v207, %v201
  %s213 = scalar_lea.vmem %s1, 3
  %v214 = vld [vmem:[%s213] ss:$8 sm:$0xf]
  %v216 = vperm.slane %v214, 0
  %v217 = vperm.slane %v214, 1
  %v218 = vperm.slane %v214, 2
  %v219 = vperm.slane %v214, 3
  %v224 = vmul.f32 %v212, %v216
  %v225 = vmul.f32 %v211, %v217
  %v226 = vmul.f32 %v210, %v218
  %v227 = vmul.f32 %v209, %v219
  %228 = vst [vmem:[#allocation2 + $0x60] sm:$0xf] %v224
  %229 = vst [vmem:[#allocation2 + $0x68] sm:$0xf] %v225
  %230 = vst [vmem:[#allocation2 + $0x70] sm:$0xf] %v226
  %231 = vst [vmem:[#allocation2 + $0x78] sm:$0xf] %v227
  %232 = vst [vmem:[#allocation2 + $0x80] sm:$0xf] %v98
  %233 = vst [vmem:[#allocation2 + $0x88] sm:$0xf] %v99
  %234 = vst [vmem:[#allocation2 + $0x90] sm:$0xf] %v100
  %235 = vst [vmem:[#allocation2 + $0x98] sm:$0xf] %v101
  %236 = vrot.lane.b32.xlu0 %v98, 127
  %v237 = vpop.permute.xlu0 %236
  %238 = vrot.lane.b32.xlu0 %v99, 127
  %v239 = vpop.permute.xlu0 %238
  %240 = vrot.lane.b32.xlu0 %v100, 127
  %v241 = vpop.permute.xlu0 %240
  %242 = vrot.lane.b32.xlu0 %v101, 127
  %v243 = vpop.permute.xlu0 %242
  %vm244 = vcmp.lt.s32.totalorder %v112, 127
  %v245 = vsel %vm244, %v241, %v243
  %v246 = vsel %vm244, %v239, %v241
  %v247 = vsel %vm244, %v237, %v239
  %v248 = vsel %vm244, %v243, %v237
  %s249 = scalar_lea.vmem %s1, 5
  %v250 = vld [vmem:[%s249] ss:$8 sm:$0xf]
  %v252 = vperm.slane %v250, 0
  %v253 = vperm.slane %v250, 1
  %v254 = vperm.slane %v250, 2
  %v255 = vperm.slane %v250, 3
  %v260 = vmul.f32 %v247, %v252
  %v261 = vmul.f32 %v246, %v253
  %v262 = vmul.f32 %v245, %v254
  %v263 = vmul.f32 %v248, %v255
  %264 = vst [vmem:[#allocation2 + $0xa0] sm:$0xf] %v260
  %265 = vst [vmem:[#allocation2 + $0xa8] sm:$0xf] %v261
  %266 = vst [vmem:[#allocation2 + $0xb0] sm:$0xf] %v262
  %267 = vst [vmem:[#allocation2 + $0xb8] sm:$0xf] %v263
  %268 = vrot.lane.b32.xlu0 %v98, 113
  %v269 = vpop.permute.xlu0 %268
  %270 = vrot.lane.b32.xlu0 %v99, 113
  %v271 = vpop.permute.xlu0 %270
  %272 = vrot.lane.b32.xlu0 %v100, 113
  %v273 = vpop.permute.xlu0 %272
  %274 = vrot.lane.b32.xlu0 %v101, 113
  %v275 = vpop.permute.xlu0 %274
  %vm276 = vcmp.lt.s32.totalorder %v112, 113
  %v277 = vsel %vm276, %v273, %v275
  %v278 = vsel %vm276, %v271, %v273
  %v279 = vsel %vm276, %v269, %v271
  %v280 = vsel %vm276, %v275, %v269
  %s281 = scalar_lea.vmem %s1, 6
  %v282 = vld [vmem:[%s281] ss:$8 sm:$0xf]
  %v284 = vperm.slane %v282, 0
  %v285 = vperm.slane %v282, 1
  %v286 = vperm.slane %v282, 2
  %v287 = vperm.slane %v282, 3
  %v292 = vmul.f32 %v279, %v284
  %v293 = vmul.f32 %v278, %v285
  %v294 = vmul.f32 %v277, %v286
  %v295 = vmul.f32 %v280, %v287
  %296 = vst [vmem:[#allocation2 + $0xc0] sm:$0xf] %v292
  %297 = vst [vmem:[#allocation2 + $0xc8] sm:$0xf] %v293
  %298 = vst [vmem:[#allocation2 + $0xd0] sm:$0xf] %v294
  %299 = vst [vmem:[#allocation2 + $0xd8] sm:$0xf] %v295
  %300 = vrot.lane.b32.xlu0 %v98, 112
  %v301 = vpop.permute.xlu0 %300
  %302 = vrot.lane.b32.xlu0 %v99, 112
  %v303 = vpop.permute.xlu0 %302
  %304 = vrot.lane.b32.xlu0 %v100, 112
  %v305 = vpop.permute.xlu0 %304
  %306 = vrot.lane.b32.xlu0 %v101, 112
  %v307 = vpop.permute.xlu0 %306
  %vm308 = vcmp.lt.s32.totalorder %v112, 112
  %v309 = vsel %vm308, %v305, %v307
  %v310 = vsel %vm308, %v303, %v305
  %v311 = vsel %vm308, %v301, %v303
  %v312 = vsel %vm308, %v307, %v301
  %s313 = scalar_lea.vmem %s1, 7
  %v314 = vld [vmem:[%s313] ss:$8 sm:$0xf]
  %v316 = vperm.slane %v314, 0
  %v317 = vperm.slane %v314, 1
  %v318 = vperm.slane %v314, 2
  %v319 = vperm.slane %v314, 3
  %v324 = vmul.f32 %v311, %v316
  %v325 = vmul.f32 %v310, %v317
  %v326 = vmul.f32 %v309, %v318
  %v327 = vmul.f32 %v312, %v319
  %328 = vst [vmem:[#allocation2 + $0xe0] sm:$0xf] %v324
  %329 = vst [vmem:[#allocation2 + $0xe8] sm:$0xf] %v325
  %330 = vst [vmem:[#allocation2 + $0xf0] sm:$0xf] %v326
  %331 = vst [vmem:[#allocation2 + $0xf8] sm:$0xf] %v327
  %332 = vrot.lane.b32.xlu0 %v98, 111
  %v333 = vpop.permute.xlu0 %332
  %334 = vrot.lane.b32.xlu0 %v99, 111
  %v335 = vpop.permute.xlu0 %334
  %336 = vrot.lane.b32.xlu0 %v100, 111
  %v337 = vpop.permute.xlu0 %336
  %338 = vrot.lane.b32.xlu0 %v101, 111
  %v339 = vpop.permute.xlu0 %338
  %vm340 = vcmp.lt.s32.totalorder %v112, 111
  %v341 = vsel %vm340, %v337, %v339
  %v342 = vsel %vm340, %v335, %v337
  %v343 = vsel %vm340, %v333, %v335
  %v344 = vsel %vm340, %v339, %v333
  %s345 = scalar_lea.vmem %s1, 32
  %v346 = vld [vmem:[%s345] ss:$8 sm:$0xf]
  %v348 = vperm.slane %v346, 0
  %v349 = vperm.slane %v346, 1
  %v350 = vperm.slane %v346, 2
  %v351 = vperm.slane %v346, 3
  %v356 = vmul.f32 %v343, %v348
  %v357 = vmul.f32 %v342, %v349
  %v358 = vmul.f32 %v341, %v350
  %v359 = vmul.f32 %v344, %v351
  %360 = vst [vmem:[#allocation2 + $0x100] sm:$0xf] %v356
  %361 = vst [vmem:[#allocation2 + $0x108] sm:$0xf] %v357
  %362 = vst [vmem:[#allocation2 + $0x110] sm:$0xf] %v358
  %363 = vst [vmem:[#allocation2 + $0x118] sm:$0xf] %v359
  %v364 = vld [vmem:[#allocation2] sm:$0xff]
  %v365 = vld [vmem:[#allocation2 + $0x8] sm:$0xff]
  %v366 = vld [vmem:[#allocation2 + $0x10] sm:$0xff]
  %v367 = vld [vmem:[#allocation2 + $0x18] sm:$0xff]
  %v368 = vld [vmem:[#allocation2 + $0x20] sm:$0xff]
  %v369 = vld [vmem:[#allocation2 + $0x28] sm:$0xff]
  %v370 = vld [vmem:[#allocation2 + $0x30] sm:$0xff]
  %v371 = vld [vmem:[#allocation2 + $0x38] sm:$0xff]
  %v372 = vld [vmem:[#allocation2 + $0x40] sm:$0xff]
  %v373 = vld [vmem:[#allocation2 + $0x48] sm:$0xff]
  %v374 = vld [vmem:[#allocation2 + $0x50] sm:$0xff]
  %v375 = vld [vmem:[#allocation2 + $0x58] sm:$0xff]
  %v376 = vld [vmem:[#allocation2 + $0x60] sm:$0xff]
  %v377 = vld [vmem:[#allocation2 + $0x68] sm:$0xff]
  %v378 = vld [vmem:[#allocation2 + $0x70] sm:$0xff]
  %v379 = vld [vmem:[#allocation2 + $0x78] sm:$0xff]
  %v380 = vld [vmem:[#allocation2 + $0x80] sm:$0xff]
  %v381 = vld [vmem:[#allocation2 + $0x88] sm:$0xff]
  %v382 = vld [vmem:[#allocation2 + $0x90] sm:$0xff]
  %v383 = vld [vmem:[#allocation2 + $0x98] sm:$0xff]
  %v384 = vld [vmem:[#allocation2 + $0xa0] sm:$0xff]
  %v385 = vld [vmem:[#allocation2 + $0xa8] sm:$0xff]
  %v386 = vld [vmem:[#allocation2 + $0xb0] sm:$0xff]
  %v387 = vld [vmem:[#allocation2 + $0xb8] sm:$0xff]
  %v388 = vld [vmem:[#allocation2 + $0xc0] sm:$0xff]
  %v389 = vld [vmem:[#allocation2 + $0xc8] sm:$0xff]
  %v390 = vld [vmem:[#allocation2 + $0xd0] sm:$0xff]
  %v391 = vld [vmem:[#allocation2 + $0xd8] sm:$0xff]
  %v392 = vld [vmem:[#allocation2 + $0xe0] sm:$0xff]
  %v393 = vld [vmem:[#allocation2 + $0xe8] sm:$0xff]
  %v394 = vld [vmem:[#allocation2 + $0xf0] sm:$0xff]
  %v395 = vld [vmem:[#allocation2 + $0xf8] sm:$0xff]
  %v396 = vld [vmem:[#allocation2 + $0x100] sm:$0xff]
  %v397 = vld [vmem:[#allocation2 + $0x108] sm:$0xff]
  %v398 = vld [vmem:[#allocation2 + $0x110] sm:$0xff]
  %v399 = vld [vmem:[#allocation2 + $0x118] sm:$0xff]
  %400 = vset.pattern.permute.xlu0 2
  %401 = vperm.xlu0 %400, %v25
  %v402 = vpop.permute.xlu0 %401
  %vm404 = vcmask 588800
  %v406 = vsel %vm404, %v102, 0
  %408 = vmatpush.msra.mxu0 0.0
  %409 = vmatpush.msra.mxu0 0.0
  %410 = vmatpush.msra.mxu0 0.0
  %411 = vmatpush.msra.mxu0 0.0
  %412 = vmatpush.msra.mxu0 0.0
  %413 = vmatpush.msra.mxu0 0.0
  %414 = vmatpush.msra.mxu0 0.0
  %415 = vmatpush.msra.mxu0 %v396
  %416 = vmatpush.msra.mxu0 %v392
  %417 = vmatpush.msra.mxu0 %v388
  %418 = vmatpush.msra.mxu0 %v384
  %419 = vmatpush.msra.mxu0 %v380
  %420 = vmatpush.msra.mxu0 %v376
  %421 = vmatpush.msra.mxu0 %v372
  %422 = vmatpush.msra.mxu0 %v368
  %423 = vmatpush.msra.mxu0 %v364
  %424 = vmatmul.f32.gmra.mxu0 %v406
  %v425 = vpop.f32.mrf.mxu0
  %v426 = vadd.f32 %v402, %v425
  %427 = vdwg.mxu0
  %428 = vmatpush.msra.mxu0 0.0
  %429 = vmatpush.msra.mxu0 0.0
  %430 = vmatpush.msra.mxu0 0.0
  %431 = vmatpush.msra.mxu0 0.0
  %432 = vmatpush.msra.mxu0 0.0
  %433 = vmatpush.msra.mxu0 0.0
  %434 = vmatpush.msra.mxu0 0.0
  %435 = vmatpush.msra.mxu0 %v397
  %436 = vmatpush.msra.mxu0 %v393
  %437 = vmatpush.msra.mxu0 %v389
  %438 = vmatpush.msra.mxu0 %v385
  %439 = vmatpush.msra.mxu0 %v381
  %440 = vmatpush.msra.mxu0 %v377
  %441 = vmatpush.msra.mxu0 %v373
  %442 = vmatpush.msra.mxu0 %v369
  %443 = vmatpush.msra.mxu0 %v365
  %444 = vmatmul.f32.gmra.mxu0 %v406
  %v445 = vpop.f32.mrf.mxu0
  %v446 = vadd.f32 %v402, %v445
  %447 = vdwg.mxu0
  %448 = vmatpush.msra.mxu0 0.0
  %449 = vmatpush.msra.mxu0 0.0
  %450 = vmatpush.msra.mxu0 0.0
  %451 = vmatpush.msra.mxu0 0.0
  %452 = vmatpush.msra.mxu0 0.0
  %453 = vmatpush.msra.mxu0 0.0
  %454 = vmatpush.msra.mxu0 0.0
  %455 = vmatpush.msra.mxu0 %v398
  %456 = vmatpush.msra.mxu0 %v394
  %457 = vmatpush.msra.mxu0 %v390
  %458 = vmatpush.msra.mxu0 %v386
  %459 = vmatpush.msra.mxu0 %v382
  %460 = vmatpush.msra.mxu0 %v378
  %461 = vmatpush.msra.mxu0 %v374
  %462 = vmatpush.msra.mxu0 %v370
  %463 = vmatpush.msra.mxu0 %v366
  %464 = vmatmul.f32.gmra.mxu0 %v406
  %v465 = vpop.f32.mrf.mxu0
  %v466 = vadd.f32 %v402, %v465
  %467 = vdwg.mxu0
  %468 = vmatpush.msra.mxu0 0.0
  %469 = vmatpush.msra.mxu0 0.0
  %470 = vmatpush.msra.mxu0 0.0
  %471 = vmatpush.msra.mxu0 0.0
  %472 = vmatpush.msra.mxu0 0.0
  %473 = vmatpush.msra.mxu0 0.0
  %474 = vmatpush.msra.mxu0 0.0
  %475 = vmatpush.msra.mxu0 %v399
  %476 = vmatpush.msra.mxu0 %v395
  %477 = vmatpush.msra.mxu0 %v391
  %478 = vmatpush.msra.mxu0 %v387
  %479 = vmatpush.msra.mxu0 %v383
  %480 = vmatpush.msra.mxu0 %v379
  %481 = vmatpush.msra.mxu0 %v375
  %482 = vmatpush.msra.mxu0 %v371
  %483 = vmatpush.msra.mxu0 %v367
  %484 = vmatmul.f32.gmra.mxu0 %v406
  %v485 = vpop.f32.mrf.mxu0
  %v486 = vadd.f32 %v402, %v485
  %487 = vdwg.mxu0
  %488 = vset.pattern.permute.xlu0 3
  %489 = vperm.xlu0 %488, %v25
  %v490 = vpop.permute.xlu0 %489
  %v492 = vmul.f32 %v426, %v490
  %v493 = vmul.f32 %v446, %v490
  %v494 = vmul.f32 %v466, %v490
  %v495 = vmul.f32 %v486, %v490
  %496 = vset.pattern.permute.xlu0 4
  %497 = vperm.xlu0 %496, %v25
  %v498 = vpop.permute.xlu0 %497
  %v500 = vadd.f32 %v492, %v498
  %v501 = vadd.f32 %v493, %v498
  %v502 = vadd.f32 %v494, %v498
  %v503 = vadd.f32 %v495, %v498
  %vm504 = vcmp.gt.f32.partialorder %v500, 0.0
  %vm505 = vcmp.gt.f32.partialorder %v501, 0.0
  %vm506 = vcmp.gt.f32.partialorder %v502, 0.0
  %vm507 = vcmp.gt.f32.partialorder %v503, 0.0
  %v508 = vmul.f32 %v500, 0.01
  %v509 = vmul.f32 %v501, 0.01
  %v510 = vmul.f32 %v502, 0.01
  %v511 = vmul.f32 %v503, 0.01
  %v512 = vsel %vm504, %v500, %v508
  %v513 = vsel %vm505, %v501, %v509
  %v514 = vsel %vm506, %v502, %v510
  %v515 = vsel %vm507, %v503, %v511
  %v516 = vld [vmem:[%s2 + $0x8] sm:$0xf]
  %517 = vrot.lane.b32.xlu0 %v512, 17
  %v518 = vpop.permute.xlu0 %517
  %519 = vrot.lane.b32.xlu0 %v513, 17
  %v520 = vpop.permute.xlu0 %519
  %521 = vrot.lane.b32.xlu0 %v514, 17
  %v522 = vpop.permute.xlu0 %521
  %523 = vrot.lane.b32.xlu0 %v515, 17
  %v524 = vpop.permute.xlu0 %523
  %v525 = vsel %vm113, %v522, %v524
  %v526 = vsel %vm113, %v520, %v522
  %v527 = vsel %vm113, %v518, %v520
  %v528 = vsel %vm113, %v524, %v518
  %v529 = vld [vmem:[%s1] ss:$8 sm:$0xf]
  %v531 = vperm.slane %v529, 0
  %v532 = vperm.slane %v529, 1
  %v533 = vperm.slane %v529, 2
  %v534 = vperm.slane %v529, 3
  %v539 = vmul.f32 %v528, %v531
  %v540 = vmul.f32 %v527, %v532
  %v541 = vmul.f32 %v526, %v533
  %v542 = vmul.f32 %v525, %v534
  %543 = vst [vmem:[#allocation2] sm:$0xf] %v539
  %544 = vst [vmem:[#allocation2 + $0x8] sm:$0xf] %v540
  %545 = vst [vmem:[#allocation2 + $0x10] sm:$0xf] %v541
  %546 = vst [vmem:[#allocation2 + $0x18] sm:$0xf] %v542
  %547 = vrot.lane.b32.xlu0 %v512, 16
  %v548 = vpop.permute.xlu0 %547
  %549 = vrot.lane.b32.xlu0 %v513, 16
  %v550 = vpop.permute.xlu0 %549
  %551 = vrot.lane.b32.xlu0 %v514, 16
  %v552 = vpop.permute.xlu0 %551
  %553 = vrot.lane.b32.xlu0 %v515, 16
  %v554 = vpop.permute.xlu0 %553
  %v555 = vsel %vm144, %v552, %v554
  %v556 = vsel %vm144, %v550, %v552
  %v557 = vsel %vm144, %v548, %v550
  %v558 = vsel %vm144, %v554, %v548
  %v559 = vld [vmem:[%s149] ss:$8 sm:$0xf]
  %v561 = vperm.slane %v559, 0
  %v562 = vperm.slane %v559, 1
  %v563 = vperm.slane %v559, 2
  %v564 = vperm.slane %v559, 3
  %v569 = vmul.f32 %v558, %v561
  %v570 = vmul.f32 %v557, %v562
  %v571 = vmul.f32 %v556, %v563
  %v572 = vmul.f32 %v555, %v564
  %573 = vst [vmem:[#allocation2 + $0x20] sm:$0xf] %v569
  %574 = vst [vmem:[#allocation2 + $0x28] sm:$0xf] %v570
  %575 = vst [vmem:[#allocation2 + $0x30] sm:$0xf] %v571
  %576 = vst [vmem:[#allocation2 + $0x38] sm:$0xf] %v572
  %577 = vrot.lane.b32.xlu0 %v512, 15
  %v578 = vpop.permute.xlu0 %577
  %579 = vrot.lane.b32.xlu0 %v513, 15
  %v580 = vpop.permute.xlu0 %579
  %581 = vrot.lane.b32.xlu0 %v514, 15
  %v582 = vpop.permute.xlu0 %581
  %583 = vrot.lane.b32.xlu0 %v515, 15
  %v584 = vpop.permute.xlu0 %583
  %v585 = vsel %vm176, %v582, %v584
  %v586 = vsel %vm176, %v580, %v582
  %v587 = vsel %vm176, %v578, %v580
  %v588 = vsel %vm176, %v584, %v578
  %v589 = vld [vmem:[%s181] ss:$8 sm:$0xf]
  %v591 = vperm.slane %v589, 0
  %v592 = vperm.slane %v589, 1
  %v593 = vperm.slane %v589, 2
  %v594 = vperm.slane %v589, 3
  %v599 = vmul.f32 %v588, %v591
  %v600 = vmul.f32 %v587, %v592
  %v601 = vmul.f32 %v586, %v593
  %v602 = vmul.f32 %v585, %v594
  %603 = vst [vmem:[#allocation2 + $0x40] sm:$0xf] %v599
  %604 = vst [vmem:[#allocation2 + $0x48] sm:$0xf] %v600
  %605 = vst [vmem:[#allocation2 + $0x50] sm:$0xf] %v601
  %606 = vst [vmem:[#allocation2 + $0x58] sm:$0xf] %v602
  %607 = vrot.lane.b32.xlu0 %v512, 1
  %v608 = vpop.permute.xlu0 %607
  %609 = vrot.lane.b32.xlu0 %v513, 1
  %v610 = vpop.permute.xlu0 %609
  %611 = vrot.lane.b32.xlu0 %v514, 1
  %v612 = vpop.permute.xlu0 %611
  %613 = vrot.lane.b32.xlu0 %v515, 1
  %v614 = vpop.permute.xlu0 %613
  %v615 = vsel %vm208, %v612, %v614
  %v616 = vsel %vm208, %v610, %v612
  %v617 = vsel %vm208, %v608, %v610
  %v618 = vsel %vm208, %v614, %v608
  %v619 = vld [vmem:[%s213] ss:$8 sm:$0xf]
  %v621 = vperm.slane %v619, 0
  %v622 = vperm.slane %v619, 1
  %v623 = vperm.slane %v619, 2
  %v624 = vperm.slane %v619, 3
  %v629 = vmul.f32 %v618, %v621
  %v630 = vmul.f32 %v617, %v622
  %v631 = vmul.f32 %v616, %v623
  %v632 = vmul.f32 %v615, %v624
  %633 = vst [vmem:[#allocation2 + $0x60] sm:$0xf] %v629
  %634 = vst [vmem:[#allocation2 + $0x68] sm:$0xf] %v630
  %635 = vst [vmem:[#allocation2 + $0x70] sm:$0xf] %v631
  %636 = vst [vmem:[#allocation2 + $0x78] sm:$0xf] %v632
  %637 = vst [vmem:[#allocation2 + $0x80] sm:$0xf] %v512
  %638 = vst [vmem:[#allocation2 + $0x88] sm:$0xf] %v513
  %639 = vst [vmem:[#allocation2 + $0x90] sm:$0xf] %v514
  %640 = vst [vmem:[#allocation2 + $0x98] sm:$0xf] %v515
  %641 = vrot.lane.b32.xlu0 %v512, 127
  %v642 = vpop.permute.xlu0 %641
  %643 = vrot.lane.b32.xlu0 %v513, 127
  %v644 = vpop.permute.xlu0 %643
  %645 = vrot.lane.b32.xlu0 %v514, 127
  %v646 = vpop.permute.xlu0 %645
  %647 = vrot.lane.b32.xlu0 %v515, 127
  %v648 = vpop.permute.xlu0 %647
  %v649 = vsel %vm244, %v646, %v648
  %v650 = vsel %vm244, %v644, %v646
  %v651 = vsel %vm244, %v642, %v644
  %v652 = vsel %vm244, %v648, %v642
  %v653 = vld [vmem:[%s249] ss:$8 sm:$0xf]
  %v655 = vperm.slane %v653, 0
  %v656 = vperm.slane %v653, 1
  %v657 = vperm.slane %v653, 2
  %v658 = vperm.slane %v653, 3
  %v663 = vmul.f32 %v651, %v655
  %v664 = vmul.f32 %v650, %v656
  %v665 = vmul.f32 %v649, %v657
  %v666 = vmul.f32 %v652, %v658
  %667 = vst [vmem:[#allocation2 + $0xa0] sm:$0xf] %v663
  %668 = vst [vmem:[#allocation2 + $0xa8] sm:$0xf] %v664
  %669 = vst [vmem:[#allocation2 + $0xb0] sm:$0xf] %v665
  %670 = vst [vmem:[#allocation2 + $0xb8] sm:$0xf] %v666
  %671 = vrot.lane.b32.xlu0 %v512, 113
  %v672 = vpop.permute.xlu0 %671
  %673 = vrot.lane.b32.xlu0 %v513, 113
  %v674 = vpop.permute.xlu0 %673
  %675 = vrot.lane.b32.xlu0 %v514, 113
  %v676 = vpop.permute.xlu0 %675
  %677 = vrot.lane.b32.xlu0 %v515, 113
  %v678 = vpop.permute.xlu0 %677
  %v679 = vsel %vm276, %v676, %v678
  %v680 = vsel %vm276, %v674, %v676
  %v681 = vsel %vm276, %v672, %v674
  %v682 = vsel %vm276, %v678, %v672
  %v683 = vld [vmem:[%s281] ss:$8 sm:$0xf]
  %v685 = vperm.slane %v683, 0
  %v686 = vperm.slane %v683, 1
  %v687 = vperm.slane %v683, 2
  %v688 = vperm.slane %v683, 3
  %v693 = vmul.f32 %v681, %v685
  %v694 = vmul.f32 %v680, %v686
  %v695 = vmul.f32 %v679, %v687
  %v696 = vmul.f32 %v682, %v688
  %697 = vst [vmem:[#allocation2 + $0xc0] sm:$0xf] %v693
  %698 = vst [vmem:[#allocation2 + $0xc8] sm:$0xf] %v694
  %699 = vst [vmem:[#allocation2 + $0xd0] sm:$0xf] %v695
  %700 = vst [vmem:[#allocation2 + $0xd8] sm:$0xf] %v696
  %701 = vrot.lane.b32.xlu0 %v512, 112
  %v702 = vpop.permute.xlu0 %701
  %703 = vrot.lane.b32.xlu0 %v513, 112
  %v704 = vpop.permute.xlu0 %703
  %705 = vrot.lane.b32.xlu0 %v514, 112
  %v706 = vpop.permute.xlu0 %705
  %707 = vrot.lane.b32.xlu0 %v515, 112
  %v708 = vpop.permute.xlu0 %707
  %v709 = vsel %vm308, %v706, %v708
  %v710 = vsel %vm308, %v704, %v706
  %v711 = vsel %vm308, %v702, %v704
  %v712 = vsel %vm308, %v708, %v702
  %v713 = vld [vmem:[%s313] ss:$8 sm:$0xf]
  %v715 = vperm.slane %v713, 0
  %v716 = vperm.slane %v713, 1
  %v717 = vperm.slane %v713, 2
  %v718 = vperm.slane %v713, 3
  %v723 = vmul.f32 %v711, %v715
  %v724 = vmul.f32 %v710, %v716
  %v725 = vmul.f32 %v709, %v717
  %v726 = vmul.f32 %v712, %v718
  %727 = vst [vmem:[#allocation2 + $0xe0] sm:$0xf] %v723
  %728 = vst [vmem:[#allocation2 + $0xe8] sm:$0xf] %v724
  %729 = vst [vmem:[#allocation2 + $0xf0] sm:$0xf] %v725
  %730 = vst [vmem:[#allocation2 + $0xf8] sm:$0xf] %v726
  %731 = vrot.lane.b32.xlu0 %v512, 111
  %v732 = vpop.permute.xlu0 %731
  %733 = vrot.lane.b32.xlu0 %v513, 111
  %v734 = vpop.permute.xlu0 %733
  %735 = vrot.lane.b32.xlu0 %v514, 111
  %v736 = vpop.permute.xlu0 %735
  %737 = vrot.lane.b32.xlu0 %v515, 111
  %v738 = vpop.permute.xlu0 %737
  %v739 = vsel %vm340, %v736, %v738
  %v740 = vsel %vm340, %v734, %v736
  %v741 = vsel %vm340, %v732, %v734
  %v742 = vsel %vm340, %v738, %v732
  %v743 = vld [vmem:[%s345] ss:$8 sm:$0xf]
  %v745 = vperm.slane %v743, 0
  %v746 = vperm.slane %v743, 1
  %v747 = vperm.slane %v743, 2
  %v748 = vperm.slane %v743, 3
  %v753 = vmul.f32 %v741, %v745
  %v754 = vmul.f32 %v740, %v746
  %v755 = vmul.f32 %v739, %v747
  %v756 = vmul.f32 %v742, %v748
  %757 = vst [vmem:[#allocation2 + $0x100] sm:$0xf] %v753
  %758 = vst [vmem:[#allocation2 + $0x108] sm:$0xf] %v754
  %759 = vst [vmem:[#allocation2 + $0x110] sm:$0xf] %v755
  %760 = vst [vmem:[#allocation2 + $0x118] sm:$0xf] %v756
  %v761 = vld [vmem:[#allocation2] sm:$0xff]
  %v762 = vld [vmem:[#allocation2 + $0x8] sm:$0xff]
  %v763 = vld [vmem:[#allocation2 + $0x10] sm:$0xff]
  %v764 = vld [vmem:[#allocation2 + $0x18] sm:$0xff]
  %v765 = vld [vmem:[#allocation2 + $0x20] sm:$0xff]
  %v766 = vld [vmem:[#allocation2 + $0x28] sm:$0xff]
  %v767 = vld [vmem:[#allocation2 + $0x30] sm:$0xff]
  %v768 = vld [vmem:[#allocation2 + $0x38] sm:$0xff]
  %v769 = vld [vmem:[#allocation2 + $0x40] sm:$0xff]
  %v770 = vld [vmem:[#allocation2 + $0x48] sm:$0xff]
  %v771 = vld [vmem:[#allocation2 + $0x50] sm:$0xff]
  %v772 = vld [vmem:[#allocation2 + $0x58] sm:$0xff]
  %v773 = vld [vmem:[#allocation2 + $0x60] sm:$0xff]
  %v774 = vld [vmem:[#allocation2 + $0x68] sm:$0xff]
  %v775 = vld [vmem:[#allocation2 + $0x70] sm:$0xff]
  %v776 = vld [vmem:[#allocation2 + $0x78] sm:$0xff]
  %v777 = vld [vmem:[#allocation2 + $0x80] sm:$0xff]
  %v778 = vld [vmem:[#allocation2 + $0x88] sm:$0xff]
  %v779 = vld [vmem:[#allocation2 + $0x90] sm:$0xff]
  %v780 = vld [vmem:[#allocation2 + $0x98] sm:$0xff]
  %v781 = vld [vmem:[#allocation2 + $0xa0] sm:$0xff]
  %v782 = vld [vmem:[#allocation2 + $0xa8] sm:$0xff]
  %v783 = vld [vmem:[#allocation2 + $0xb0] sm:$0xff]
  %v784 = vld [vmem:[#allocation2 + $0xb8] sm:$0xff]
  %v785 = vld [vmem:[#allocation2 + $0xc0] sm:$0xff]
  %v786 = vld [vmem:[#allocation2 + $0xc8] sm:$0xff]
  %v787 = vld [vmem:[#allocation2 + $0xd0] sm:$0xff]
  %v788 = vld [vmem:[#allocation2 + $0xd8] sm:$0xff]
  %v789 = vld [vmem:[#allocation2 + $0xe0] sm:$0xff]
  %v790 = vld [vmem:[#allocation2 + $0xe8] sm:$0xff]
  %v791 = vld [vmem:[#allocation2 + $0xf0] sm:$0xff]
  %v792 = vld [vmem:[#allocation2 + $0xf8] sm:$0xff]
  %v793 = vld [vmem:[#allocation2 + $0x100] sm:$0xff]
  %v794 = vld [vmem:[#allocation2 + $0x108] sm:$0xff]
  %v795 = vld [vmem:[#allocation2 + $0x110] sm:$0xff]
  %v796 = vld [vmem:[#allocation2 + $0x118] sm:$0xff]
  %797 = vset.pattern.permute.xlu0 5
  %798 = vperm.xlu0 %797, %v25
  %v799 = vpop.permute.xlu0 %798
  %v802 = vsel %vm404, %v516, 0
  %804 = vmatpush.msra.mxu0 0.0
  %805 = vmatpush.msra.mxu0 0.0
  %806 = vmatpush.msra.mxu0 0.0
  %807 = vmatpush.msra.mxu0 0.0
  %808 = vmatpush.msra.mxu0 0.0
  %809 = vmatpush.msra.mxu0 0.0
  %810 = vmatpush.msra.mxu0 0.0
  %811 = vmatpush.msra.mxu0 %v793
  %812 = vmatpush.msra.mxu0 %v789
  %813 = vmatpush.msra.mxu0 %v785
  %814 = vmatpush.msra.mxu0 %v781
  %815 = vmatpush.msra.mxu0 %v777
  %816 = vmatpush.msra.mxu0 %v773
  %817 = vmatpush.msra.mxu0 %v769
  %818 = vmatpush.msra.mxu0 %v765
  %819 = vmatpush.msra.mxu0 %v761
  %820 = vmatmul.f32.gmra.mxu0 %v802
  %v821 = vpop.f32.mrf.mxu0
  %v822 = vadd.f32 %v799, %v821
  %823 = vdwg.mxu0
  %824 = vmatpush.msra.mxu0 0.0
  %825 = vmatpush.msra.mxu0 0.0
  %826 = vmatpush.msra.mxu0 0.0
  %827 = vmatpush.msra.mxu0 0.0
  %828 = vmatpush.msra.mxu0 0.0
  %829 = vmatpush.msra.mxu0 0.0
  %830 = vmatpush.msra.mxu0 0.0
  %831 = vmatpush.msra.mxu0 %v794
  %832 = vmatpush.msra.mxu0 %v790
  %833 = vmatpush.msra.mxu0 %v786
  %834 = vmatpush.msra.mxu0 %v782
  %835 = vmatpush.msra.mxu0 %v778
  %836 = vmatpush.msra.mxu0 %v774
  %837 = vmatpush.msra.mxu0 %v770
  %838 = vmatpush.msra.mxu0 %v766
  %839 = vmatpush.msra.mxu0 %v762
  %840 = vmatmul.f32.gmra.mxu0 %v802
  %v841 = vpop.f32.mrf.mxu0
  %v842 = vadd.f32 %v799, %v841
  %843 = vdwg.mxu0
  %844 = vmatpush.msra.mxu0 0.0
  %845 = vmatpush.msra.mxu0 0.0
  %846 = vmatpush.msra.mxu0 0.0
  %847 = vmatpush.msra.mxu0 0.0
  %848 = vmatpush.msra.mxu0 0.0
  %849 = vmatpush.msra.mxu0 0.0
  %850 = vmatpush.msra.mxu0 0.0
  %851 = vmatpush.msra.mxu0 %v795
  %852 = vmatpush.msra.mxu0 %v791
  %853 = vmatpush.msra.mxu0 %v787
  %854 = vmatpush.msra.mxu0 %v783
  %855 = vmatpush.msra.mxu0 %v779
  %856 = vmatpush.msra.mxu0 %v775
  %857 = vmatpush.msra.mxu0 %v771
  %858 = vmatpush.msra.mxu0 %v767
  %859 = vmatpush.msra.mxu0 %v763
  %860 = vmatmul.f32.gmra.mxu0 %v802
  %v861 = vpop.f32.mrf.mxu0
  %v862 = vadd.f32 %v799, %v861
  %863 = vdwg.mxu0
  %864 = vmatpush.msra.mxu0 0.0
  %865 = vmatpush.msra.mxu0 0.0
  %866 = vmatpush.msra.mxu0 0.0
  %867 = vmatpush.msra.mxu0 0.0
  %868 = vmatpush.msra.mxu0 0.0
  %869 = vmatpush.msra.mxu0 0.0
  %870 = vmatpush.msra.mxu0 0.0
  %871 = vmatpush.msra.mxu0 %v796
  %872 = vmatpush.msra.mxu0 %v792
  %873 = vmatpush.msra.mxu0 %v788
  %874 = vmatpush.msra.mxu0 %v784
  %875 = vmatpush.msra.mxu0 %v780
  %876 = vmatpush.msra.mxu0 %v776
  %877 = vmatpush.msra.mxu0 %v772
  %878 = vmatpush.msra.mxu0 %v768
  %879 = vmatpush.msra.mxu0 %v764
  %880 = vmatmul.f32.gmra.mxu0 %v802
  %v881 = vpop.f32.mrf.mxu0
  %v882 = vadd.f32 %v799, %v881
  %883 = vdwg.mxu0
  %v884 = vadd.f32 %v822, %v20
  %v885 = vadd.f32 %v842, %v21
  %v886 = vadd.f32 %v862, %v22
  %v887 = vadd.f32 %v882, %v23
  %vm888 = vcmask 1043456
  %v889 = vsel %vm888, %v884, 0.0
  %v890 = vsel %vm888, %v885, 0.0
  %v891 = vadd.f32 %v889, %v890
  %892 = vadd.xlane.f32.xlu0 %v891
  %v893 = vpop.xlane.xlu0 %892
  %vm894 = vcmask 3072
  %895 = vst.msk [vmem:[#allocation3] sm:$0xf] %vm894, %v893
  %v896 = vsel %vm888, %v886, 0.0
  %v897 = vsel %vm888, %v887, 0.0
  %v898 = vadd.f32 %v896, %v897
  %899 = vadd.xlane.f32.xlu0 %v898
  %v900 = vpop.xlane.xlu0 %899
  %vm901 = vcmask 11272
  %902 = vst.msk [vmem:[#allocation3] sm:$0xf] %vm901, %v900
  %v903 = vld [vmem:[#allocation3] sm:$0xf]
  %v904 = vmul.f32 %v903, 0.00390625
  %vm905 = vcmask 11264
  %v906 = vsel %vm905, %v904, 0.0
  %v907 = vrot.slane %v906, 4
  %v908 = vadd.f32 %v906, %v907
  %v909 = vrot.slane %v908, 2
  %v910 = vadd.f32 %v908, %v909
  %v911 = vrot.slane %v910, 1
  %v912 = vadd.f32 %v910, %v911
  %v913 = vadd.f32 %v912, %v24
  %v914 = vrcp.pop 5.0
  %v915 = vmul.f32 5.0, %v914
  %v916 = vsub.f32 1.0, %v915
  %v917 = vmul.f32 %v914, %v916
  %v918 = vadd.f32 %v914, %v917
  %vm919 = vweird.f32 %v914
  %v920 = vsel %vm919, %v914, %v918
  %v921 = vmul.f32 %v913, %v920
  %v922 = vsub.f32 %v904, %v921
  %v923 = vsub.f32 %v24, %v921
  %v924 = vmul.f32 %v922, %v922
  %v925 = vsel %vm905, %v924, 0.0
  %v926 = vrot.slane %v925, 4
  %v927 = vadd.f32 %v925, %v926
  %v928 = vrot.slane %v927, 2
  %v929 = vadd.f32 %v927, %v928
  %v930 = vrot.slane %v929, 1
  %v931 = vadd.f32 %v929, %v930
  %v932 = vmul.f32 %v923, %v923
  %v933 = vadd.f32 %v931, %v932
  %v934 = vmul.f32 %v933, %v920
  %v935 = vadd.f32 %v934, 1e-05
  %v936 = vrsqrt.pop %v935
  %v937 = vmul.f32 %v936, %v935
  %v938 = vmul.f32 %v937, %v936
  %v939 = vmul.f32 0.5, %v938
  %v940 = vsub.f32 1.5, %v939
  %v941 = vmul.f32 %v936, %v940
  %vm942 = vweird.f32 %v935
  %vm943 = vweird.f32 %v936
  %vm944 = vmor %vm942, %vm943
  %v945 = vsel %vm944, %v936, %v941
  %v946 = vmul.f32 %v922, %v945
  %v947 = vmul.f32 %v923, %v945
  %949 = vset.pattern.permute.xlu0 4
  %950 = vperm.xlu0 %949, %v31
  %v951 = vpop.permute.xlu0 %950
  %954 = vset.pattern.permute.xlu0 4
  %955 = vperm.xlu0 %954, %v32
  %v956 = vpop.permute.xlu0 %955
  %959 = vset.pattern.permute.xlu0 4
  %960 = vperm.xlu0 %959, %v33
  %v961 = vpop.permute.xlu0 %960
  %964 = vset.pattern.permute.xlu0 4
  %965 = vperm.xlu0 %964, %v34
  %v966 = vpop.permute.xlu0 %965
  %v968 = vmul.f32 %v951, %v947
  %v969 = vmul.f32 %v956, %v947
  %v970 = vmul.f32 %v961, %v947
  %v971 = vmul.f32 %v966, %v947
  %vm972 = vcmask 31744
  %v973 = vsel %vm972, %v31, 0
  %v975 = vsel %vm972, %v32, 0
  %v977 = vsel %vm972, %v33, 0
  %v979 = vsel %vm972, %v34, 0
  %v982 = vsel %vm888, %v946, 0
  %984 = vmatpush.msra.mxu0 0.0
  %985 = vmatpush.msra.mxu0 0.0
  %986 = vmatpush.msra.mxu0 0.0
  %987 = vmatpush.msra.mxu0 0.0
  %988 = vmatpush.msra.mxu0 0.0
  %989 = vmatpush.msra.mxu0 0.0
  %990 = vmatpush.msra.mxu0 0.0
  %991 = vmatpush.msra.mxu0 0.0
  %992 = vmatpush.msra.mxu0 0.0
  %993 = vmatpush.msra.mxu0 0.0
  %994 = vmatpush.msra.mxu0 0.0
  %995 = vmatpush.msra.mxu0 0.0
  %996 = vmatpush.msra.mxu0 0.0
  %997 = vmatpush.msra.mxu0 0.0
  %998 = vmatpush.msra.mxu0 0.0
  %999 = vmatpush.msra.mxu0 %v982
  %1000 = vmatmul.f32.gmra.mxu0 %v973
  %v1001 = vpop.f32.mrf.mxu0
  %v1002 = vadd.f32 %v968, %v1001
  %1003 = vmatmul.f32.gmra.mxu0 %v975
  %v1004 = vpop.f32.mrf.mxu0
  %v1005 = vadd.f32 %v969, %v1004
  %1006 = vmatmul.f32.gmra.mxu0 %v977
  %v1007 = vpop.f32.mrf.mxu0
  %v1008 = vadd.f32 %v970, %v1007
  %1009 = vmatmul.f32.gmra.mxu0 %v979
  %v1010 = vpop.f32.mrf.mxu0
  %v1011 = vadd.f32 %v971, %v1010
  %1012 = vdwg.mxu0
  %1014 = vset.pattern.permute.xlu0 6
  %1015 = vperm.xlu0 %1014, %v26
  %v1016 = vpop.permute.xlu0 %1015
  %1019 = vset.pattern.permute.xlu0 6
  %1020 = vperm.xlu0 %1019, %v27
  %v1021 = vpop.permute.xlu0 %1020
  %1024 = vset.pattern.permute.xlu0 6
  %1025 = vperm.xlu0 %1024, %v28
  %v1026 = vpop.permute.xlu0 %1025
  %1029 = vset.pattern.permute.xlu0 6
  %1030 = vperm.xlu0 %1029, %v29
  %v1031 = vpop.permute.xlu0 %1030
  %v1033 = vadd.f32 %v1002, %v1016
  %v1034 = vadd.f32 %v1005, %v1021
  %v1035 = vadd.f32 %v1008, %v1026
  %v1036 = vadd.f32 %v1011, %v1031
  %vm1037 = vcmp.gt.f32.partialorder %v1033, 0.0
  %vm1038 = vcmp.gt.f32.partialorder %v1034, 0.0
  %vm1039 = vcmp.gt.f32.partialorder %v1035, 0.0
  %vm1040 = vcmp.gt.f32.partialorder %v1036, 0.0
  %v1041 = vmul.f32 %v1033, 0.01
  %v1042 = vmul.f32 %v1034, 0.01
  %v1043 = vmul.f32 %v1035, 0.01
  %v1044 = vmul.f32 %v1036, 0.01
  %v1045 = vsel %vm1037, %v1033, %v1041
  %v1046 = vsel %vm1038, %v1034, %v1042
  %v1047 = vsel %vm1039, %v1035, %v1043
  %v1048 = vsel %vm1040, %v1036, %v1044
  %vm1049 = vcmask 15360
  %v1050 = vsel %vm1049, %v1045, 0.0
  %v1051 = vsel %vm1049, %v1046, 0.0
  %v1052 = vadd.f32 %v1050, %v1051
  %v1053 = vrot.slane %v1052, 4
  %v1054 = vadd.f32 %v1052, %v1053
  %v1055 = vrot.slane %v1054, 2
  %v1056 = vadd.f32 %v1054, %v1055
  %v1057 = vrot.slane %v1056, 1
  %v1058 = vadd.f32 %v1056, %v1057
  %v1059 = vrcp.pop 16.0
  %v1060 = vmul.f32 16.0, %v1059
  %v1061 = vsub.f32 1.0, %v1060
  %v1062 = vmul.f32 %v1059, %v1061
  %v1063 = vadd.f32 %v1059, %v1062
  %vm1064 = vweird.f32 %v1059
  %v1065 = vsel %vm1064, %v1059, %v1063
  %v1066 = vmul.f32 %v1058, %v1065
  %v1067 = vsub.f32 %v1045, %v1066
  %v1068 = vsub.f32 %v1046, %v1066
  %v1069 = vmul.f32 %v1067, %v1067
  %v1070 = vmul.f32 %v1068, %v1068
  %v1071 = vsel %vm1049, %v1069, 0.0
  %v1072 = vsel %vm1049, %v1070, 0.0
  %v1073 = vadd.f32 %v1071, %v1072
  %v1074 = vrot.slane %v1073, 4
  %v1075 = vadd.f32 %v1073, %v1074
  %v1076 = vrot.slane %v1075, 2
  %v1077 = vadd.f32 %v1075, %v1076
  %v1078 = vrot.slane %v1077, 1
  %v1079 = vadd.f32 %v1077, %v1078
  %v1080 = vmul.f32 %v1079, %v1065
  %v1081 = vadd.f32 %v1080, 1e-05
  %v1082 = vrsqrt.pop %v1081
  %v1083 = vmul.f32 %v1082, %v1081
  %v1084 = vmul.f32 %v1083, %v1082
  %v1085 = vmul.f32 0.5, %v1084
  %v1086 = vsub.f32 1.5, %v1085
  %v1087 = vmul.f32 %v1082, %v1086
  %vm1088 = vweird.f32 %v1081
  %vm1089 = vweird.f32 %v1082
  %vm1090 = vmor %vm1088, %vm1089
  %v1091 = vsel %vm1090, %v1082, %v1087
  %v1092 = vmul.f32 %v1067, %v1091
  %v1093 = vmul.f32 %v1068, %v1091
  %1094 = vst.msk [vmem:[#allocation4] sm:$0xff] %vm1049, %v1092
  %1095 = vst.msk [vmem:[#allocation4 + $0x8] sm:$0xff] %vm1049, %v1093
  %v1096 = vsel %vm1049, %v1047, 0.0
  %v1097 = vsel %vm1049, %v1048, 0.0
  %v1098 = vadd.f32 %v1096, %v1097
  %v1099 = vrot.slane %v1098, 4
  %v1100 = vadd.f32 %v1098, %v1099
  %v1101 = vrot.slane %v1100, 2
  %v1102 = vadd.f32 %v1100, %v1101
  %v1103 = vrot.slane %v1102, 1
  %v1104 = vadd.f32 %v1102, %v1103
  %v1105 = vmul.f32 %v1104, %v1065
  %v1106 = vsub.f32 %v1047, %v1105
  %v1107 = vsub.f32 %v1048, %v1105
  %v1108 = vmul.f32 %v1106, %v1106
  %v1109 = vmul.f32 %v1107, %v1107
  %v1110 = vsel %vm1049, %v1108, 0.0
  %v1111 = vsel %vm1049, %v1109, 0.0
  %v1112 = vadd.f32 %v1110, %v1111
  %v1113 = vrot.slane %v1112, 4
  %v1114 = vadd.f32 %v1112, %v1113
  %v1115 = vrot.slane %v1114, 2
  %v1116 = vadd.f32 %v1114, %v1115
  %v1117 = vrot.slane %v1116, 1
  %v1118 = vadd.f32 %v1116, %v1117
  %v1119 = vmul.f32 %v1118, %v1065
  %v1120 = vadd.f32 %v1119, 1e-05
  %v1121 = vrsqrt.pop %v1120
  %v1122 = vmul.f32 %v1121, %v1120
  %v1123 = vmul.f32 %v1122, %v1121
  %v1124 = vmul.f32 0.5, %v1123
  %v1125 = vsub.f32 1.5, %v1124
  %v1126 = vmul.f32 %v1121, %v1125
  %vm1127 = vweird.f32 %v1120
  %vm1128 = vweird.f32 %v1121
  %vm1129 = vmor %vm1127, %vm1128
  %v1130 = vsel %vm1129, %v1121, %v1126
  %v1131 = vmul.f32 %v1106, %v1130
  %v1132 = vmul.f32 %v1107, %v1130
  %1133 = vst.msk [vmem:[#allocation4 + $0x10] sm:$0xff] %vm1049, %v1131
  %1134 = vst.msk [vmem:[#allocation4 + $0x18] sm:$0xff] %vm1049, %v1132
  %v1135 = vld [vmem:[#allocation4] sm:$0xff]
  %v1136 = vld [vmem:[#allocation4 + $0x8] sm:$0xff]
  %v1137 = vld [vmem:[#allocation4 + $0x10] sm:$0xff]
  %v1138 = vld [vmem:[#allocation4 + $0x18] sm:$0xff]
  %1139 = vset.pattern.permute.xlu0 7
  %1140 = vperm.xlu0 %1139, %v26
  %v1141 = vpop.permute.xlu0 %1140
  %1144 = vset.pattern.permute.xlu0 7
  %1145 = vperm.xlu0 %1144, %v30
  %v1146 = vpop.permute.xlu0 %1145
  %vm1148 = vcmask 261120
  %v1150 = vsel %vm1148, %v35, 0
  %v1153 = vsel %vm1148, %v36, 0
  %1155 = vmatpush.msra.mxu0 0.0
  %1156 = vmatpush.msra.mxu0 0.0
  %1157 = vmatpush.msra.mxu0 0.0
  %1158 = vmatpush.msra.mxu0 0.0
  %1159 = vmatpush.msra.mxu0 0.0
  %1160 = vmatpush.msra.mxu0 0.0
  %1161 = vmatpush.msra.mxu0 0.0
  %1162 = vmatpush.msra.mxu0 0.0
  %1163 = vmatpush.msra.mxu0 0.0
  %1164 = vmatpush.msra.mxu0 0.0
  %1165 = vmatpush.msra.mxu0 0.0
  %1166 = vmatpush.msra.mxu0 0.0
  %1167 = vmatpush.msra.mxu0 %v1138
  %1168 = vmatpush.msra.mxu0 %v1137
  %1169 = vmatpush.msra.mxu0 %v1136
  %1170 = vmatpush.msra.mxu0 %v1135
  %1171 = vmatmul.f32.gmra.mxu0 %v1150
  %v1172 = vpop.f32.mrf.mxu0
  %v1173 = vadd.f32 %v1141, %v1172
  %1174 = vmatmul.f32.gmra.mxu0 %v1153
  %v1175 = vpop.f32.mrf.mxu0
  %v1176 = vadd.f32 %v1146, %v1175
  %1177 = vdwg.mxu0
  %v1178 = vsub.f32 0.0, %v1173
  %v1179 = vsub.f32 0.0, %v1176
  %v1180 = vmul.f32 %v1178, 1.442695
  %v1181 = vpow.pop %v1180
  %v1182 = vmul.f32 %v1179, 1.442695
  %v1183 = vpow.pop %v1182
  %v1184 = vadd.f32 %v1181, 1.0
  %v1185 = vadd.f32 %v1183, 1.0
  %v1186 = vrcp.pop %v1184
  %v1187 = vmul.f32 %v1184, %v1186
  %v1188 = vsub.f32 1.0, %v1187
  %v1189 = vmul.f32 %v1186, %v1188
  %v1190 = vadd.f32 %v1186, %v1189
  %vm1191 = vweird.f32 %v1184
  %vm1192 = vweird.f32 %v1186
  %vm1193 = vmor %vm1191, %vm1192
  %v1194 = vsel %vm1193, %v1186, %v1190
  %v1195 = vand.u32 2147483647, %v1184
  %vm1196 = vcmp.eq.f32.partialorder %v1195, 8.507059e+37
  %v1197 = vand.u32 %v1184, 2147483648
  %v1198 = vor.u32 1.1754944e-38, %v1197
  %v1199 = vsel %vm1196, %v1198, %v1194
  %v1200 = vmul.f32 1.0, %v1199
  %v1201 = vrcp.pop %v1185
  %v1202 = vmul.f32 %v1185, %v1201
  %v1203 = vsub.f32 1.0, %v1202
  %v1204 = vmul.f32 %v1201, %v1203
  %v1205 = vadd.f32 %v1201, %v1204
  %vm1206 = vweird.f32 %v1185
  %vm1207 = vweird.f32 %v1201
  %vm1208 = vmor %vm1206, %vm1207
  %v1209 = vsel %vm1208, %v1201, %v1205
  %v1210 = vand.u32 2147483647, %v1185
  %vm1211 = vcmp.eq.f32.partialorder %v1210, 8.507059e+37
  %v1212 = vand.u32 %v1185, 2147483648
  %v1213 = vor.u32 1.1754944e-38, %v1212
  %v1214 = vsel %vm1211, %v1213, %v1209
  %v1215 = vmul.f32 1.0, %v1214
  %v1216 = vlaneseq
  %v1217 = vshrl.u32 %v1216, 7
  %v1218 = vadd.s32 %v1217, 8
  %vm1219 = vcmp.eq.s32.totalorder %v1217, 10
  %vm1220 = vcmp.eq.s32.totalorder %v1218, 10
  %v1221 = vsel %vm1219, %v1200, %v1173
  %v1222 = vsel %vm1220, %v1215, %v1176
  %1223 = vst.msk [vmem:[%s5] sm:$0xff] %vm1049, %v1221
  %vm1224 = vcmask 10240
  %1225 = vst.msk [vmem:[%s5 + $0x8] sm:$0x7] %vm1224, %v1222
  // Predicated region
  $region22: #{net_forward.1} parent=0 // pred_check
    _
  $region23: #{net_forward.1} parent=0 // pred_check_branch
    %1227 = sbr.rel (0) target = $region25
  $region24: #{net_forward.1} parent=0 // pred_region
    _
  $region25: #{net_forward.1} parent=0 // pred_fallthru
    _
  // Predicated region
  $region26: #{net_forward.1} parent=0 // pred_check
    _
  $region27: #{net_forward.1} parent=0 // pred_check_branch
    %1229 = sbr.rel (0) target = $region29
  $region28: #{net_forward.1} parent=0 // pred_region
    _
  $region29: #{net_forward.1} parent=0 // pred_fallthru
    _

</llo_original>
